<compile_context>
chip_gen: v6e
topology: v6e:2x2x1
jax: 0.10.0
libtpu: 0.0.40
codegen_flags: <defaults>
</compile_context>

<pallas_src>
import numpy as np

import jax
import jax.numpy as jnp
from jax import lax
from jax.experimental import pallas as pl
from jax.experimental.pallas import tpu as pltpu


# ----------------------------------------------------------------------------
# Fused Pallas kernels
# ----------------------------------------------------------------------------

def _bottleneck_kernel_nohalo(x_ref, w1_ref, w2_ref, w3_ref,
                              b1_ref, b2_ref, b3_ref,
                              o_ref, h1_ref):
    """Whole-depth tile (nd == 1): no halo inputs, padded rows are zeros.

    x_ref : (1, D, S*Cin)   lane-dense input tile (S = H*W)
    w1    : (S*Cin, S*P)    block-diagonal conv1 weight, BN1 scale folded, bf16
    w2    : (3, S*P, S*P)   banded conv2 weights (kh/kw/pad + BN2 folded), bf16
    w3    : (S*P, S*Cin)    block-diagonal conv3 weight, BN3 scale folded, bf16
    b*    : (1, S*C)        folded BN biases (f32)
    o_ref : (1, D, S*Cin)   output tile
    h1_ref: (D+2, S*P) f32  depth-padded conv1 activations (VMEM scratch)
    """
    d = x_ref.shape[1]
    sp = h1_ref.shape[1]
    f32 = jnp.float32
    bf16 = jnp.bfloat16

    # conv1 (+ folded bn1) + relu : one bf16 matmul, f32 accumulate.
    y1 = jnp.dot(x_ref[0].astype(bf16), w1_ref[...],
                 preferred_element_type=f32)
    h1_ref[1:d + 1, :] = jnp.maximum(y1 + b1_ref[...], 0.0)
    # Depth zero-padding rows (pad=1 of conv2).
    h1_ref[0:1, :] = jnp.zeros((1, sp), f32)
    h1_ref[d + 1:d + 2, :] = jnp.zeros((1, sp), f32)

    # conv2 (3x3x3, pad=1, stride=1): three banded matmuls over shifted
    # depth windows of h1.
    acc = jnp.dot(h1_ref[0:d, :].astype(bf16), w2_ref[0],
                  preferred_element_type=f32)
    acc = acc + jnp.dot(h1_ref[1:d + 1, :].astype(bf16), w2_ref[1],
                        preferred_element_type=f32)
    acc = acc + jnp.dot(h1_ref[2:d + 2, :].astype(bf16), w2_ref[2],
                        preferred_element_type=f32)
    h2 = jnp.maximum(acc + b2_ref[...], 0.0)

    # conv3 (+ folded bn3) + residual add + relu.  Residual is re-read from
    # the resident input block here (not kept live across the matmuls).
    y = jnp.dot(h2.astype(bf16), w3_ref[...], preferred_element_type=f32)
    y = y + b3_ref[...] + x_ref[0].astype(f32)
    o_ref[0] = jnp.maximum(y, 0.0).astype(o_ref.dtype)


def _bottleneck_kernel_halo(x_ref, xtop_ref, xbot_ref,
                            w1_ref, w2_ref, w3_ref,
                            b1_ref, b2_ref, b3_ref,
                            o_ref, xpad_ref, h1_ref):
    """Depth-tiled path (nd > 1): halo rows merged into the main conv1 matmul.

    xtop/xbot : (1, hr, S*Cin) blocks holding the neighbouring depth rows
    xpad_ref  : (TD+2, S*Cin)  staging scratch (top halo, tile rows, bot halo)
    h1_ref    : (TD+2, S*P) f32 depth-padded conv1 activations
    """
    td = x_ref.shape[1]
    sp = h1_ref.shape[1]
    t = pl.program_id(1)
    nt = pl.num_programs(1)
    f32 = jnp.float32
    bf16 = jnp.bfloat16

    # Stage tile rows + depth-halo rows contiguously so conv1 is ONE matmul.
    top_row = xtop_ref.shape[1] - 1
    xpad_ref[0:1, :] = xtop_ref[0, top_row:top_row + 1, :]
    xpad_ref[1:td + 1, :] = x_ref[0]
    xpad_ref[td + 1:td + 2, :] = xbot_ref[0, 0:1, :]

    # conv1 (+ folded bn1) + relu on all TD+2 rows in a single bf16 matmul.
    y1 = jnp.dot(xpad_ref[...].astype(bf16), w1_ref[...],
                 preferred_element_type=f32)
    h1_ref[...] = jnp.maximum(y1 + b1_ref[...], 0.0)

    # Zero the depth-padded rows only at the volume boundaries.
    @pl.when(t == 0)
    def _():
        h1_ref[0:1, :] = jnp.zeros((1, sp), f32)

    @pl.when(t == nt - 1)
    def _():
        h1_ref[td + 1:td + 2, :] = jnp.zeros((1, sp), f32)

    # conv2: three banded matmuls over shifted depth windows.
    acc = jnp.dot(h1_ref[0:td, :].astype(bf16), w2_ref[0],
                  preferred_element_type=f32)
    acc = acc + jnp.dot(h1_ref[1:td + 1, :].astype(bf16), w2_ref[1],
                        preferred_element_type=f32)
    acc = acc + jnp.dot(h1_ref[2:td + 2, :].astype(bf16), w2_ref[2],
                        preferred_element_type=f32)
    h2 = jnp.maximum(acc + b2_ref[...], 0.0)

    # conv3 (+ folded bn3) + residual add + relu.
    y = jnp.dot(h2.astype(bf16), w3_ref[...], preferred_element_type=f32)
    y = y + b3_ref[...] + x_ref[0].astype(f32)
    o_ref[0] = jnp.maximum(y, 0.0).astype(o_ref.dtype)


# ----------------------------------------------------------------------------
# Host-side parameter preparation (done once, like folding BN)
# ----------------------------------------------------------------------------

def _conv2_banded_weights(w2, hh, ww):
    """(3,3,3,Ci,Co) -> (3, H*W*Ci, H*W*Co); folds kh/kw taps + H/W zero-pad."""
    w2 = np.asarray(w2, np.float32)
    ci, co = w2.shape[3], w2.shape[4]
    s = hh * ww
    band = np.zeros((3, s * ci, s * co), np.float32)
    for kd in range(3):
        for kh in range(3):
            for kw in range(3):
                for ho in range(hh):
                    hi = ho + kh - 1
                    if hi < 0 or hi >= hh:
                        continue
                    for wo in range(ww):
                        wi = wo + kw - 1
                        if wi < 0 or wi >= ww:
                            continue
                        si, so = hi * ww + wi, ho * ww + wo
                        band[kd, si * ci:(si + 1) * ci,
                             so * co:(so + 1) * co] = w2[kd, kh, kw]
    return band


def prepare_params(params, hh, ww, eps=1e-5, weight_dtype=jnp.bfloat16):
    """Fold BN (running stats) into the conv weights (scale) and biases, and
    build the merged-layout bf16 weight matrices consumed by the kernels."""
    s = hh * ww

    def fold(g, be, m, v):
        g, be, m, v = (np.asarray(a, np.float32) for a in (g, be, m, v))
        sc = g / np.sqrt(v + eps)
        return sc, be - m * sc

    s1, b1 = fold(params["g1"], params["be1"], params["m1"], params["v1"])
    s2, b2 = fold(params["g2"], params["be2"], params["m2"], params["v2"])
    s3, b3 = fold(params["g3"], params["be3"], params["m3"], params["v3"])

    # BN scale folded into the output channels of each conv weight.
    w1 = np.asarray(params["w1"], np.float32) * s1[None, :]          # (Cin, P)
    w2 = np.asarray(params["w2"], np.float32) * s2[None, None, None, None, :]
    w3 = np.asarray(params["w3"], np.float32) * s3[None, :]          # (P, Cin)

    eye = np.eye(s, dtype=np.float32)
    tile = lambda v: np.tile(v, s)[None, :].astype(np.float32)       # (1, S*C)

    return dict(
        planes=int(w1.shape[1]),
        w1big=jnp.asarray(np.kron(eye, w1), weight_dtype),           # (S*Cin, S*P)
        w2band=jnp.asarray(_conv2_banded_weights(w2, hh, ww), weight_dtype),
        w3big=jnp.asarray(np.kron(eye, w3), weight_dtype),           # (S*P, S*Cin)
        b1=jnp.asarray(tile(b1)), b2=jnp.asarray(tile(b2)), b3=jnp.asarray(tile(b3)),
    )


# ----------------------------------------------------------------------------
# Wrapper
# ----------------------------------------------------------------------------

def bottleneck_forward(x, prep, block_d=None):
    """x: (N, D, H, W, Cin) with Cin == 4*planes (downsample=None, stride=1)."""
    n, d, h, w, cin = x.shape
    s = h * w
    p = prep["planes"]
    sc, sp = s * cin, s * p
    if cin != 4 * p:
        raise ValueError("downsample=None requires in_planes == 4 * planes")

    # Default: whole depth per step (largest MXU M, no halo reads/matmuls).
    if block_d is None:
        block_d = d
    if d % block_d or (block_d % 8 and block_d != d):
        block_d = d
    nd = d // block_d

    x3 = x.reshape(n, d, sc)      # lane-dense view (channels merged in lanes)

    weights_bytes = sum(int(np.prod(prep[k].shape)) * prep[k].dtype.itemsize
                        for k in ("w1big", "w2band", "w3big"))
    io_bytes = int(x3.size) * x.dtype.itemsize
    in_amp = 1 if nd == 1 else 1 + 2 * 8 / block_d
    cost = pl.CostEstimate(
        flops=int(2 * n * d * (2 * sc * sp + 3 * sp * sp)),
        transcendentals=0,
        bytes_accessed=int(io_bytes * (1 + in_amp) + weights_bytes))

    if nd == 1:
        # Specialized no-halo path: single HBM read of x, grid over batch only.
        cw2 = lambda b: (0, 0)
        cw3 = lambda b: (0, 0, 0)
        out = pl.pallas_call(
            _bottleneck_kernel_nohalo,
            out_shape=jax.ShapeDtypeStruct((n, d, sc), x.dtype),
            grid=(n,),
            in_specs=[
                pl.BlockSpec((1, d, sc), lambda b: (b, 0, 0)),
                pl.BlockSpec((sc, sp), cw2),      # w1 (block-diag, bf16)
                pl.BlockSpec((3, sp, sp), cw3),   # w2 (banded, bf16)
                pl.BlockSpec((sp, sc), cw2),      # w3 (block-diag, bf16)
                pl.BlockSpec((1, sp), cw2),       # bn1 bias
                pl.BlockSpec((1, sp), cw2),       # bn2 bias
                pl.BlockSpec((1, sc), cw2),       # bn3 bias
            ],
            out_specs=pl.BlockSpec((1, d, sc), lambda b: (b, 0, 0)),
            scratch_shapes=[pltpu.VMEM((d + 2, sp), jnp.float32)],
            compiler_params=pltpu.CompilerParams(
                dimension_semantics=("parallel",),
                vmem_limit_bytes=64 << 20),
            cost_estimate=cost,
        )(x3, prep["w1big"], prep["w2band"], prep["w3big"],
          prep["b1"], prep["b2"], prep["b3"])
        return out.reshape(n, d, h, w, cin)

    # Depth-tiled path with one-row halos (block_d % 8 == 0 => d % 8 == 0).
    hr = 8

    def xmain_map(b, t):
        return (b, t, 0)

    def xtop_map(b, t):             # block holding global depth row t*TD - 1
        return (b, jnp.maximum(t * block_d - 1, 0) // hr, 0)

    def xbot_map(b, t):             # block holding global depth row (t+1)*TD
        return (b, jnp.minimum((t + 1) * block_d, d - 1) // hr, 0)

    cw2 = lambda b, t: (0, 0)
    cw3 = lambda b, t: (0, 0, 0)

    out = pl.pallas_call(
        _bottleneck_kernel_halo,
        out_shape=jax.ShapeDtypeStruct((n, d, sc), x.dtype),
        grid=(n, nd),
        in_specs=[
            pl.BlockSpec((1, block_d, sc), xmain_map),
            pl.BlockSpec((1, hr, sc), xtop_map),
            pl.BlockSpec((1, hr, sc), xbot_map),
            pl.BlockSpec((sc, sp), cw2),          # w1 (block-diag, bf16)
            pl.BlockSpec((3, sp, sp), cw3),       # w2 (banded, bf16)
            pl.BlockSpec((sp, sc), cw2),          # w3 (block-diag, bf16)
            pl.BlockSpec((1, sp), cw2),           # bn1 bias
            pl.BlockSpec((1, sp), cw2),           # bn2 bias
            pl.BlockSpec((1, sc), cw2),           # bn3 bias
        ],
        out_specs=pl.BlockSpec((1, block_d, sc), xmain_map),
        scratch_shapes=[pltpu.VMEM((block_d + 2, sc), x.dtype),
                        pltpu.VMEM((block_d + 2, sp), jnp.float32)],
        compiler_params=pltpu.CompilerParams(
            dimension_semantics=("parallel", "parallel"),
            vmem_limit_bytes=64 << 20),
        cost_estimate=cost,
    )(x3, x3, x3,
      prep["w1big"], prep["w2band"], prep["w3big"],
      prep["b1"], prep["b2"], prep["b3"])
    return out.reshape(n, d, h, w, cin)


# ----------------------------------------------------------------------------
# Pure-JAX reference (for correctness check)
# ----------------------------------------------------------------------------

def bottleneck_reference(x, params, eps=1e-5):
    dn = ("NDHWC", "DHWIO", "NDHWC")

    def bn(y, g, b, m, v):
        return (y - m) * lax.rsqrt(v + eps) * g + b

    cin = x.shape[-1]
    planes = params["w1"].shape[1]
    w1 = params["w1"].reshape(1, 1, 1, cin, planes)
    w3 = params["w3"].reshape(1, 1, 1, planes, cin)

    y = lax.conv_general_dilated(x, w1, (1, 1, 1), "VALID", dimension_numbers=dn)
    y = jax.nn.relu(bn(y, params["g1"], params["be1"], params["m1"], params["v1"]))
    y = lax.conv_general_dilated(y, params["w2"], (1, 1, 1), "SAME",
                                 dimension_numbers=dn)
    y = jax.nn.relu(bn(y, params["g2"], params["be2"], params["m2"], params["v2"]))
    y = lax.conv_general_dilated(y, w3, (1, 1, 1), "VALID", dimension_numbers=dn)
    y = bn(y, params["g3"], params["be3"], params["m3"], params["v3"])
    return jax.nn.relu(y + x)


# ----------------------------------------------------------------------------
# Main
# ----------------------------------------------------------------------------

if __name__ == "__main__":
    key = jax.random.PRNGKey(0)
    N, D, H, W = 2, 16, 8, 8
    planes = 4
    in_planes = planes * 4  # downsample=None => residual shapes must match

    keys = jax.random.split(key, 16)
    x = jax.random.normal(keys[0], (N, D, H, W, in_planes), jnp.float32)

    def bn_params(k, c):
        k1, k2, k3, k4 = jax.random.split(k, 4)
        return dict(
            gamma=jax.random.uniform(k1, (c,), jnp.float32, 0.5, 1.5),
            beta=0.1 * jax.random.normal(k2, (c,), jnp.float32),
            mean=0.1 * jax.random.normal(k3, (c,), jnp.float32),
            var=jax.random.uniform(k4, (c,), jnp.float32, 0.5, 1.5),
        )

    bn1 = bn_params(keys[4], planes)
    bn2 = bn_params(keys[5], planes)
    bn3 = bn_params(keys[6], in_planes)

    params = dict(
        # conv weights stored channels-last: (Cin, Cout) and (3,3,3,Cin,Cout)
        w1=0.2 * jax.random.normal(keys[1], (in_planes, planes), jnp.float32),
        w2=0.2 * jax.random.normal(keys[2], (3, 3, 3, planes, planes), jnp.float32),
        w3=0.2 * jax.random.normal(keys[3], (planes, in_planes), jnp.float32),
        g1=bn1["gamma"], be1=bn1["beta"], m1=bn1["mean"], v1=bn1["var"],
        g2=bn2["gamma"], be2=bn2["beta"], m2=bn2["mean"], v2=bn2["var"],
        g3=bn3["gamma"], be3=bn3["beta"], m3=bn3["mean"], v3=bn3["var"],
    )

    prep = prepare_params(params, H, W)
    ref = jax.block_until_ready(bottleneck_reference(x, params))

    # Tolerances reflect bf16 MXU operands (f32 accumulation).
    ATOL, RTOL = 1e-1, 1e-1

    # 1) Default path: block_d = D -> single depth tile, no-halo kernel.
    out_full = jax.block_until_ready(bottleneck_forward(x, prep))
    assert out_full.shape == (N, D, H, W, in_planes)
    err_full = float(jnp.max(jnp.abs(out_full - ref)))
    assert jnp.allclose(out_full, ref, atol=ATOL, rtol=RTOL), \
        f"no-halo path max abs err {err_full}"

    # 2) Depth-tiled path: block_d=8 -> grid (N, 2), exercises merged-halo conv1.
    out_tiled = jax.block_until_ready(bottleneck_forward(x, prep, block_d=8))
    err_tiled = float(jnp.max(jnp.abs(out_tiled - ref)))
    assert jnp.allclose(out_tiled, ref, atol=ATOL, rtol=RTOL), \
        f"halo path max abs err {err_tiled}"

    print("KERNEL_OK")
</pallas_src>

<mosaic_0001>
module attributes {stable_mosaic.version = 11 : i64} {
  func.func @_bottleneck_kernel_nohalo(%arg0: i32, %arg1: memref<1x16x1024xf32, #tpu.memory_space<vmem>>, %arg2: memref<1024x256xbf16, #tpu.memory_space<vmem>>, %arg3: memref<3x256x256xbf16, #tpu.memory_space<vmem>>, %arg4: memref<256x1024xbf16, #tpu.memory_space<vmem>>, %arg5: memref<1x256xf32, #tpu.memory_space<vmem>>, %arg6: memref<1x256xf32, #tpu.memory_space<vmem>>, %arg7: memref<1x1024xf32, #tpu.memory_space<vmem>>, %arg8: memref<1x16x1024xf32, #tpu.memory_space<vmem>>, %arg9: memref<18x256xf32, #tpu.memory_space<vmem>>) attributes {dimension_semantics = [#tpu.dimension_semantics<parallel>], iteration_bounds = array<i64: 2>, scalar_prefetch = 0 : i64, scratch_operands = 1 : i64, tpu.core_type = #tpu.core_type<tc>, window_params = [{transform_indices = @transform_0, window_bounds = array<i64: 1, 16, 1024>}, {pipeline_mode = #tpu.pipeline_mode<synchronous>, transform_indices = @transform_1, window_bounds = array<i64: 1024, 256>}, {pipeline_mode = #tpu.pipeline_mode<synchronous>, transform_indices = @transform_2, window_bounds = array<i64: 3, 256, 256>}, {pipeline_mode = #tpu.pipeline_mode<synchronous>, transform_indices = @transform_3, window_bounds = array<i64: 256, 1024>}, {pipeline_mode = #tpu.pipeline_mode<synchronous>, transform_indices = @transform_4, window_bounds = array<i64: 1, 256>}, {pipeline_mode = #tpu.pipeline_mode<synchronous>, transform_indices = @transform_5, window_bounds = array<i64: 1, 256>}, {pipeline_mode = #tpu.pipeline_mode<synchronous>, transform_indices = @transform_6, window_bounds = array<i64: 1, 1024>}, {transform_indices = @transform_7, window_bounds = array<i64: 1, 16, 1024>}]} {
    %c0 = arith.constant 0 : index
    %c0_0 = arith.constant 0 : index
    %c0_1 = arith.constant 0 : index
    %0 = vector.load %arg1[%c0, %c0_0, %c0_1] : memref<1x16x1024xf32, #tpu.memory_space<vmem>>, vector<1x16x1024xf32>
    %1 = vector.shape_cast %0 : vector<1x16x1024xf32> to vector<16x1024xf32>
    %2 = arith.truncf %1 : vector<16x1024xf32> to vector<16x1024xbf16>
    %c0_2 = arith.constant 0 : index
    %c0_3 = arith.constant 0 : index
    %3 = vector.load %arg2[%c0_2, %c0_3] : memref<1024x256xbf16, #tpu.memory_space<vmem>>, vector<1024x256xbf16>
    %cst = arith.constant dense<0.000000e+00> : vector<16x256xf32>
    %4 = tpu.matmul %2, %3, %cst {dimension_numbers = #tpu.dot_dimension_numbers<[1], [0], [0], [1], [0, 0, 1, 1], [], []>} : vector<16x1024xbf16>, vector<1024x256xbf16>, vector<16x256xf32> -> vector<16x256xf32>
    %c0_4 = arith.constant 0 : index
    %c0_5 = arith.constant 0 : index
    %5 = vector.load %arg5[%c0_4, %c0_5] : memref<1x256xf32, #tpu.memory_space<vmem>>, vector<1x256xf32>
    %6 = vector.broadcast %5 : vector<1x256xf32> to vector<16x256xf32>
    %7 = arith.addf %4, %6 : vector<16x256xf32>
    %cst_6 = arith.constant 0.000000e+00 : f32
    %8 = vector.broadcast %cst_6 : f32 to vector<16x256xf32>
    %9 = arith.maximumf %7, %8 : vector<16x256xf32>
    %c1 = arith.constant 1 : index
    %c0_7 = arith.constant 0 : index
    %10 = vector.load %arg9[%c1, %c0_7] : memref<18x256xf32, #tpu.memory_space<vmem>>, vector<16x256xf32>
    tpu.vector_store %arg9[%c1, %c0_7], %9 {strides = array<i32>} : memref<18x256xf32, #tpu.memory_space<vmem>>, vector<16x256xf32>,
    %cst_8 = arith.constant 0.000000e+00 : f32
    %11 = vector.broadcast %cst_8 : f32 to vector<1x256xf32>
    %c0_9 = arith.constant 0 : index
    %c0_10 = arith.constant 0 : index
    %12 = vector.load %arg9[%c0_9, %c0_10] : memref<18x256xf32, #tpu.memory_space<vmem>>, vector<1x256xf32>
    tpu.vector_store %arg9[%c0_9, %c0_10], %11 {strides = array<i32>} : memref<18x256xf32, #tpu.memory_space<vmem>>, vector<1x256xf32>,
    %cst_11 = arith.constant 0.000000e+00 : f32
    %13 = vector.broadcast %cst_11 : f32 to vector<1x256xf32>
    %c17 = arith.constant 17 : index
    %c0_12 = arith.constant 0 : index
    %14 = vector.load %arg9[%c17, %c0_12] : memref<18x256xf32, #tpu.memory_space<vmem>>, vector<1x256xf32>
    tpu.vector_store %arg9[%c17, %c0_12], %13 {strides = array<i32>} : memref<18x256xf32, #tpu.memory_space<vmem>>, vector<1x256xf32>,
    %c0_13 = arith.constant 0 : index
    %c0_14 = arith.constant 0 : index
    %15 = vector.load %arg9[%c0_13, %c0_14] : memref<18x256xf32, #tpu.memory_space<vmem>>, vector<16x256xf32>
    %16 = arith.truncf %15 : vector<16x256xf32> to vector<16x256xbf16>
    %c0_15 = arith.constant 0 : index
    %c0_16 = arith.constant 0 : index
    %c0_17 = arith.constant 0 : index
    %17 = vector.load %arg3[%c0_15, %c0_16, %c0_17] : memref<3x256x256xbf16, #tpu.memory_space<vmem>>, vector<1x256x256xbf16>
    %18 = vector.shape_cast %17 : vector<1x256x256xbf16> to vector<256x256xbf16>
    %cst_18 = arith.constant dense<0.000000e+00> : vector<16x256xf32>
    %19 = tpu.matmul %16, %18, %cst_18 {dimension_numbers = #tpu.dot_dimension_numbers<[1], [0], [0], [1], [0, 0, 1, 1], [], []>} : vector<16x256xbf16>, vector<256x256xbf16>, vector<16x256xf32> -> vector<16x256xf32>
    %c1_19 = arith.constant 1 : index
    %c0_20 = arith.constant 0 : index
    %20 = vector.load %arg9[%c1_19, %c0_20] : memref<18x256xf32, #tpu.memory_space<vmem>>, vector<16x256xf32>
    %21 = arith.truncf %20 : vector<16x256xf32> to vector<16x256xbf16>
    %c1_21 = arith.constant 1 : index
    %c0_22 = arith.constant 0 : index
    %c0_23 = arith.constant 0 : index
    %22 = vector.load %arg3[%c1_21, %c0_22, %c0_23] : memref<3x256x256xbf16, #tpu.memory_space<vmem>>, vector<1x256x256xbf16>
    %23 = vector.shape_cast %22 : vector<1x256x256xbf16> to vector<256x256xbf16>
    %cst_24 = arith.constant dense<0.000000e+00> : vector<16x256xf32>
    %24 = tpu.matmul %21, %23, %cst_24 {dimension_numbers = #tpu.dot_dimension_numbers<[1], [0], [0], [1], [0, 0, 1, 1], [], []>} : vector<16x256xbf16>, vector<256x256xbf16>, vector<16x256xf32> -> vector<16x256xf32>
    %25 = arith.addf %19, %24 : vector<16x256xf32>
    %c2 = arith.constant 2 : index
    %c0_25 = arith.constant 0 : index
    %26 = vector.load %arg9[%c2, %c0_25] : memref<18x256xf32, #tpu.memory_space<vmem>>, vector<16x256xf32>
    %27 = arith.truncf %26 : vector<16x256xf32> to vector<16x256xbf16>
    %c2_26 = arith.constant 2 : index
    %c0_27 = arith.constant 0 : index
    %c0_28 = arith.constant 0 : index
    %28 = vector.load %arg3[%c2_26, %c0_27, %c0_28] : memref<3x256x256xbf16, #tpu.memory_space<vmem>>, vector<1x256x256xbf16>
    %29 = vector.shape_cast %28 : vector<1x256x256xbf16> to vector<256x256xbf16>
    %cst_29 = arith.constant dense<0.000000e+00> : vector<16x256xf32>
    %30 = tpu.matmul %27, %29, %cst_29 {dimension_numbers = #tpu.dot_dimension_numbers<[1], [0], [0], [1], [0, 0, 1, 1], [], []>} : vector<16x256xbf16>, vector<256x256xbf16>, vector<16x256xf32> -> vector<16x256xf32>
    %31 = arith.addf %25, %30 : vector<16x256xf32>
    %c0_30 = arith.constant 0 : index
    %c0_31 = arith.constant 0 : index
    %32 = vector.load %arg6[%c0_30, %c0_31] : memref<1x256xf32, #tpu.memory_space<vmem>>, vector<1x256xf32>
    %33 = vector.broadcast %32 : vector<1x256xf32> to vector<16x256xf32>
    %34 = arith.addf %31, %33 : vector<16x256xf32>
    %cst_32 = arith.constant 0.000000e+00 : f32
    %35 = vector.broadcast %cst_32 : f32 to vector<16x256xf32>
    %36 = arith.maximumf %34, %35 : vector<16x256xf32>
    %37 = arith.truncf %36 : vector<16x256xf32> to vector<16x256xbf16>
    %c0_33 = arith.constant 0 : index
    %c0_34 = arith.constant 0 : index
    %38 = vector.load %arg4[%c0_33, %c0_34] : memref<256x1024xbf16, #tpu.memory_space<vmem>>, vector<256x1024xbf16>
    %cst_35 = arith.constant dense<0.000000e+00> : vector<16x1024xf32>
    %39 = tpu.matmul %37, %38, %cst_35 {dimension_numbers = #tpu.dot_dimension_numbers<[1], [0], [0], [1], [0, 0, 1, 1], [], []>} : vector<16x256xbf16>, vector<256x1024xbf16>, vector<16x1024xf32> -> vector<16x1024xf32>
    %c0_36 = arith.constant 0 : index
    %c0_37 = arith.constant 0 : index
    %40 = vector.load %arg7[%c0_36, %c0_37] : memref<1x1024xf32, #tpu.memory_space<vmem>>, vector<1x1024xf32>
    %41 = vector.broadcast %40 : vector<1x1024xf32> to vector<16x1024xf32>
    %42 = arith.addf %39, %41 : vector<16x1024xf32>
    %c0_38 = arith.constant 0 : index
    %c0_39 = arith.constant 0 : index
    %c0_40 = arith.constant 0 : index
    %43 = vector.load %arg1[%c0_38, %c0_39, %c0_40] : memref<1x16x1024xf32, #tpu.memory_space<vmem>>, vector<1x16x1024xf32>
    %44 = vector.shape_cast %43 : vector<1x16x1024xf32> to vector<16x1024xf32>
    %45 = arith.addf %42, %44 : vector<16x1024xf32>
    %cst_41 = arith.constant 0.000000e+00 : f32
    %46 = vector.broadcast %cst_41 : f32 to vector<16x1024xf32>
    %47 = arith.maximumf %45, %46 : vector<16x1024xf32>
    %c0_42 = arith.constant 0 : index
    %c0_43 = arith.constant 0 : index
    %c0_44 = arith.constant 0 : index
    %48 = vector.load %arg8[%c0_42, %c0_43, %c0_44] : memref<1x16x1024xf32, #tpu.memory_space<vmem>>, vector<1x16x1024xf32>
    %49 = vector.shape_cast %48 : vector<1x16x1024xf32> to vector<16x1024xf32>
    %50 = vector.shape_cast %47 : vector<16x1024xf32> to vector<1x16x1024xf32>
    tpu.vector_store %arg8[%c0_42, %c0_43, %c0_44], %50 {strides = array<i32>} : memref<1x16x1024xf32, #tpu.memory_space<vmem>>, vector<1x16x1024xf32>,
    return
  }
  func.func @transform_0(%arg0: i32) -> (i32, i32, i32) {
    %c0_i32 = arith.constant 0 : i32
    %c0_i32_0 = arith.constant 0 : i32
    %c0_i32_1 = arith.constant 0 : i32
    return %arg0, %c0_i32, %c0_i32_0 : i32, i32, i32
  }
  func.func @transform_1(%arg0: i32) -> (i32, i32) {
    %c0_i32 = arith.constant 0 : i32
    %c0_i32_0 = arith.constant 0 : i32
    %c0_i32_1 = arith.constant 0 : i32
    return %c0_i32, %c0_i32_0 : i32, i32
  }
  func.func @transform_2(%arg0: i32) -> (i32, i32, i32) {
    %c0_i32 = arith.constant 0 : i32
    %c0_i32_0 = arith.constant 0 : i32
    %c0_i32_1 = arith.constant 0 : i32
    %c0_i32_2 = arith.constant 0 : i32
    return %c0_i32, %c0_i32_0, %c0_i32_1 : i32, i32, i32
  }
  func.func @transform_3(%arg0: i32) -> (i32, i32) {
    %c0_i32 = arith.constant 0 : i32
    %c0_i32_0 = arith.constant 0 : i32
    %c0_i32_1 = arith.constant 0 : i32
    return %c0_i32, %c0_i32_0 : i32, i32
  }
  func.func @transform_4(%arg0: i32) -> (i32, i32) {
    %c0_i32 = arith.constant 0 : i32
    %c0_i32_0 = arith.constant 0 : i32
    %c0_i32_1 = arith.constant 0 : i32
    return %c0_i32, %c0_i32_0 : i32, i32
  }
  func.func @transform_5(%arg0: i32) -> (i32, i32) {
    %c0_i32 = arith.constant 0 : i32
    %c0_i32_0 = arith.constant 0 : i32
    %c0_i32_1 = arith.constant 0 : i32
    return %c0_i32, %c0_i32_0 : i32, i32
  }
  func.func @transform_6(%arg0: i32) -> (i32, i32) {
    %c0_i32 = arith.constant 0 : i32
    %c0_i32_0 = arith.constant 0 : i32
    %c0_i32_1 = arith.constant 0 : i32
    return %c0_i32, %c0_i32_0 : i32, i32
  }
  func.func @transform_7(%arg0: i32) -> (i32, i32, i32) {
    %c0_i32 = arith.constant 0 : i32
    %c0_i32_0 = arith.constant 0 : i32
    %c0_i32_1 = arith.constant 0 : i32
    return %arg0, %c0_i32, %c0_i32_0 : i32, i32, i32
  }
}

</mosaic_0001>

<llo_original>
// kernel: tpu_custom_call.1
$region0: #{tpu_custom_call.1}
  #allocation0 [shape = 'u32[]', space=smem, size = 0x4, offset = 0x4, fixed_abs, tag = 'smem constant byte address 0x4 - core index']
  #allocation1 [shape = 'u32[144,128]{1,0:T(1,128)}', space=vmem, size = 0x12000, scoped, tag = 'internal scratch']
  #allocation2 [shape = 'f32[18,256]{1,0:T(8,128)}', space=vmem, size = 0x6000, scoped, tag = 'scratch operand']
  %s0 = inlined_call_operand.hbm [shape: f32[2,16,1024], index: 0, kind: input, shape index: {}]
  %s1 = inlined_call_operand.hbm [shape: bf16[1024,256], index: 1, kind: input, shape index: {}]
  %s2 = inlined_call_operand.hbm [shape: bf16[3,256,256], index: 2, kind: input, shape index: {}]
  %s3 = inlined_call_operand.hbm [shape: bf16[256,1024], index: 3, kind: input, shape index: {}]
  %s4 = inlined_call_operand.vmem [shape: f32[1,256], index: 4, kind: input, shape index: {}]
  %s5 = inlined_call_operand.hbm [shape: f32[1,256], index: 5, kind: input, shape index: {}]
  %s6 = inlined_call_operand.vmem [shape: f32[1,1024], index: 6, kind: input, shape index: {}]
  %s7 = inlined_call_operand.hbm [shape: f32[2,16,1024], index: 7, kind: output, shape index: {}]
  %s8 = sld [smem:[#allocation0]]
  $region81: #{tpu_custom_call.1} parent=0
    _
  %s10 = ssub.s32 1, %s8
  %s11 = scalar_select 0, %s10, %s8
  $region1: #{tpu_custom_call.1} parent=0
    #allocation3 [shape = 'u8[131072]{0}', space=vmem, size = 0x20000, scoped, tag = 'input window, operand 0']
    #allocation4 [shape = 's32[2]{0}', space=sflag, size = 0x8, scoped, tag = 'scoped memory for tpu_custom_call.1']
    #allocation5 [shape = 's32[2]{0}', space=sflag, size = 0x8, scoped, tag = 'scoped memory for tpu_custom_call.1']
    #allocation6 [shape = 'u8[524288]{0}', space=vmem, size = 0x80000, scoped, tag = 'input window, operand 1, single buffered']
    #allocation7 [shape = 's32[1]{0}', space=sflag, size = 0x4, scoped, tag = 'scoped memory for tpu_custom_call.1']
    #allocation8 [shape = 'u8[393216]{0}', space=vmem, size = 0x60000, scoped, tag = 'input window, operand 2, single buffered']
    #allocation9 [shape = 'u8[524288]{0}', space=vmem, size = 0x80000, scoped, tag = 'input window, operand 3, single buffered']
    #allocation10 [shape = 's32[1]{0}', space=sflag, size = 0x4, scoped, tag = 'scoped memory for tpu_custom_call.1']
    #allocation11 [shape = 'u8[1024]{0}', space=vmem, size = 0x400, scoped, tag = 'input window, operand 5, single buffered']
    #allocation12 [shape = 'u8[131072]{0}', space=vmem, size = 0x20000, scoped, tag = 'output window, operand 0']
    %12 = vsyncpa [#allocation4], 0
    %s13 = scalar_lea.sflag [#allocation4], 1
    %14 = vsyncpa %s13, 0
    %15 = vsyncpa [#allocation7], 0
    %16 = vsyncpa [#allocation10], 0
    %17 = vsyncpa [#allocation5], 0
    %s18 = scalar_lea.sflag [#allocation5], 1
    %19 = vsyncpa %s18, 0
    loop: start=0, step=1, limit=4
    $region2: #{tpu_custom_call.1} parent=1 // loop_pre_header
      _
    $region3: #{tpu_custom_call.1} parent=1 // loop_header
      %s21 = sphi 0, %s25
      %p22 = scmp.ge.s32.totalorder %s21, 4
      %s31 = sphi 0, %s33
      %s34 = sphi 0, %s31
      %s35 = sphi 0, %s34
      %s51 = sphi 0, %s35
      %s55 = sphi 0, %s55
      %s57 = sphi 0, %s55
      %s58 = sphi 0, %s57
      %s72 = sphi 0, %s58
      %s76 = sphi 0, %s76
      %s78 = sphi 0, %s76
      %s79 = sphi 0, %s78
      %s93 = sphi 0, %s79
      %s97 = sphi 0, %s97
      %s99 = sphi 0, %s97
      %s100 = sphi 0, %s99
      %s114 = sphi 0, %s100
      %s118 = sphi 0, %s118
      %s120 = sphi 0, %s118
      %s121 = sphi 0, %s120
      %s135 = sphi 0, %s121
      %s139 = sphi 0, %s139
      %s141 = sphi 0, %s139
      %s142 = sphi 0, %s141
      %s156 = sphi 0, %s142
      %s160 = sphi 0, %s160
      %s162 = sphi 0, %s160
      %s163 = sphi 0, %s162
      %s177 = sphi 0, %s163
      %s183 = sphi 0, %s185
      %s186 = sphi 0, %s183
      %s187 = sphi 0, %s186
      %s203 = sphi 0, %s187
    $region4: #{tpu_custom_call.1} parent=1 // loop_header_branch
      %24 = sbr.rel (%p22) target = $region8
    $region5: #{tpu_custom_call.1} parent=1 // loop_body
      %s26 = ssub.s32 %s21, 1
      %s27 = ssub.s32 %s21, 2
      %s28 = sadd.s32 %s21, 1
      %s29 = ssub.s32 %s21, %s28
      %p30 = scmp.eq.s32.totalorder %s29, 0
      %s32 = sadd.s32 %s31, 1
      %s33 = scalar_select %p30, %s31, %s32
      %p36 = pneg %p30
      %p37 = scmp.eq.s32.totalorder %s21, 1
      %p38 = por %p36, %p37
      %p39 = scmp.ne.s32.totalorder %s31, %s34
      %p40 = scmp.eq.s32.totalorder %s21, 0
      %p41 = por %p39, %p40
      %p42 = scmp.ne.s32.totalorder %s31, %s34
      %p43 = scmp.eq.s32.totalorder %s26, 1
      %p44 = por %p42, %p43
      %p45 = scmp.ne.s32.totalorder %s34, %s35
      %p46 = scmp.eq.s32.totalorder %s26, 0
      %p47 = por %p45, %p46
      %p48 = scmp.ne.s32.totalorder %s34, %s35
      %p49 = scmp.eq.s32.totalorder %s27, 1
      %p50 = por %p48, %p49
      %p52 = scmp.ne.s32.totalorder %s35, %s51
      %p53 = scmp.eq.s32.totalorder %s27, 0
      %p54 = por %p52, %p53
      %s56 = sadd.s32 %s55, 1
      %p59 = scmp.eq.s32.totalorder %s21, 1
      %p60 = scmp.ne.s32.totalorder %s55, %s57
      %p61 = scmp.eq.s32.totalorder %s21, 0
      %p62 = por %p60, %p61
      %p63 = scmp.ne.s32.totalorder %s55, %s57
      %p64 = scmp.eq.s32.totalorder %s26, 1
      %p65 = por %p63, %p64
      %p66 = scmp.ne.s32.totalorder %s57, %s58
      %p67 = scmp.eq.s32.totalorder %s26, 0
      %p68 = por %p66, %p67
      %p69 = scmp.ne.s32.totalorder %s57, %s58
      %p70 = scmp.eq.s32.totalorder %s27, 1
      %p71 = por %p69, %p70
      %p73 = scmp.ne.s32.totalorder %s58, %s72
      %p74 = scmp.eq.s32.totalorder %s27, 0
      %p75 = por %p73, %p74
      %s77 = sadd.s32 %s76, 1
      %p80 = scmp.eq.s32.totalorder %s21, 1
      %p81 = scmp.ne.s32.totalorder %s76, %s78
      %p82 = scmp.eq.s32.totalorder %s21, 0
      %p83 = por %p81, %p82
      %p84 = scmp.ne.s32.totalorder %s76, %s78
      %p85 = scmp.eq.s32.totalorder %s26, 1
      %p86 = por %p84, %p85
      %p87 = scmp.ne.s32.totalorder %s78, %s79
      %p88 = scmp.eq.s32.totalorder %s26, 0
      %p89 = por %p87, %p88
      %p90 = scmp.ne.s32.totalorder %s78, %s79
      %p91 = scmp.eq.s32.totalorder %s27, 1
      %p92 = por %p90, %p91
      %p94 = scmp.ne.s32.totalorder %s79, %s93
      %p95 = scmp.eq.s32.totalorder %s27, 0
      %p96 = por %p94, %p95
      %s98 = sadd.s32 %s97, 1
      %p101 = scmp.eq.s32.totalorder %s21, 1
      %p102 = scmp.ne.s32.totalorder %s97, %s99
      %p103 = scmp.eq.s32.totalorder %s21, 0
      %p104 = por %p102, %p103
      %p105 = scmp.ne.s32.totalorder %s97, %s99
      %p106 = scmp.eq.s32.totalorder %s26, 1
      %p107 = por %p105, %p106
      %p108 = scmp.ne.s32.totalorder %s99, %s100
      %p109 = scmp.eq.s32.totalorder %s26, 0
      %p110 = por %p108, %p109
      %p111 = scmp.ne.s32.totalorder %s99, %s100
      %p112 = scmp.eq.s32.totalorder %s27, 1
      %p113 = por %p111, %p112
      %p115 = scmp.ne.s32.totalorder %s100, %s114
      %p116 = scmp.eq.s32.totalorder %s27, 0
      %p117 = por %p115, %p116
      %s119 = sadd.s32 %s118, 1
      %p122 = scmp.eq.s32.totalorder %s21, 1
      %p123 = scmp.ne.s32.totalorder %s118, %s120
      %p124 = scmp.eq.s32.totalorder %s21, 0
      %p125 = por %p123, %p124
      %p126 = scmp.ne.s32.totalorder %s118, %s120
      %p127 = scmp.eq.s32.totalorder %s26, 1
      %p128 = por %p126, %p127
      %p129 = scmp.ne.s32.totalorder %s120, %s121
      %p130 = scmp.eq.s32.totalorder %s26, 0
      %p131 = por %p129, %p130
      %p132 = scmp.ne.s32.totalorder %s120, %s121
      %p133 = scmp.eq.s32.totalorder %s27, 1
      %p134 = por %p132, %p133
      %p136 = scmp.ne.s32.totalorder %s121, %s135
      %p137 = scmp.eq.s32.totalorder %s27, 0
      %p138 = por %p136, %p137
      %s140 = sadd.s32 %s139, 1
      %p143 = scmp.eq.s32.totalorder %s21, 1
      %p144 = scmp.ne.s32.totalorder %s139, %s141
      %p145 = scmp.eq.s32.totalorder %s21, 0
      %p146 = por %p144, %p145
      %p147 = scmp.ne.s32.totalorder %s139, %s141
      %p148 = scmp.eq.s32.totalorder %s26, 1
      %p149 = por %p147, %p148
      %p150 = scmp.ne.s32.totalorder %s141, %s142
      %p151 = scmp.eq.s32.totalorder %s26, 0
      %p152 = por %p150, %p151
      %p153 = scmp.ne.s32.totalorder %s141, %s142
      %p154 = scmp.eq.s32.totalorder %s27, 1
      %p155 = por %p153, %p154
      %p157 = scmp.ne.s32.totalorder %s142, %s156
      %p158 = scmp.eq.s32.totalorder %s27, 0
      %p159 = por %p157, %p158
      %s161 = sadd.s32 %s160, 1
      %p164 = scmp.eq.s32.totalorder %s21, 1
      %p165 = scmp.ne.s32.totalorder %s160, %s162
      %p166 = scmp.eq.s32.totalorder %s21, 0
      %p167 = por %p165, %p166
      %p168 = scmp.ne.s32.totalorder %s160, %s162
      %p169 = scmp.eq.s32.totalorder %s26, 1
      %p170 = por %p168, %p169
      %p171 = scmp.ne.s32.totalorder %s162, %s163
      %p172 = scmp.eq.s32.totalorder %s26, 0
      %p173 = por %p171, %p172
      %p174 = scmp.ne.s32.totalorder %s162, %s163
      %p175 = scmp.eq.s32.totalorder %s27, 1
      %p176 = por %p174, %p175
      %p178 = scmp.ne.s32.totalorder %s163, %s177
      %p179 = scmp.eq.s32.totalorder %s27, 0
      %p180 = por %p178, %p179
      %s181 = ssub.s32 %s21, %s28
      %p182 = scmp.eq.s32.totalorder %s181, 0
      %s184 = sadd.s32 %s183, 1
      %s185 = scalar_select %p182, %s183, %s184
      %p188 = pneg %p182
      %p189 = scmp.eq.s32.totalorder %s21, 1
      %p190 = por %p188, %p189
      %p191 = scmp.ne.s32.totalorder %s183, %s186
      %p192 = scmp.eq.s32.totalorder %s21, 0
      %p193 = por %p191, %p192
      %p194 = scmp.ne.s32.totalorder %s183, %s186
      %p195 = scmp.eq.s32.totalorder %s26, 1
      %p196 = por %p194, %p195
      %p197 = scmp.ne.s32.totalorder %s186, %s187
      %p198 = scmp.eq.s32.totalorder %s26, 0
      %p199 = por %p197, %p198
      %p200 = scmp.ne.s32.totalorder %s186, %s187
      %p201 = scmp.eq.s32.totalorder %s27, 1
      %p202 = por %p200, %p201
      %p204 = scmp.ne.s32.totalorder %s187, %s203
      %p205 = scmp.eq.s32.totalorder %s27, 0
      %p206 = por %p204, %p205
      %p207 = scmp.le.s32.totalorder 1, %s21
      %p208 = scmp.lt.s32.totalorder %s21, 3
      %p209 = pnand %p207, %p208
      %p210 = pneg %p209
      // Predicated region
      $region9: #{tpu_custom_call.1} parent=5 // pred_check
        _
      $region10: #{tpu_custom_call.1} parent=5 // pred_check_branch
        %212 = sbr.rel (%p209) target = $region12
      $region11: #{tpu_custom_call.1} parent=5 // pred_region
        %s213 = ssub.s32 %s21, 1
        // Predicated region
        $region13: #{tpu_custom_call.1} parent=11 // pred_check
          %p214 = pneg %p68
        $region14: #{tpu_custom_call.1} parent=11 // pred_check_branch
          %216 = sbr.rel (%p214) target = $region16
        $region15: #{tpu_custom_call.1} parent=11 // pred_region
          %s218 = ssub.s32 16384, 16384
          %219 = vsyncadd [#allocation7], %s218
          %s220 = sshll.u32 [#allocation6], 4
          %s221 = int_to_ptr.vmem [resolvable:$true] %s220
          %226 = dma.hbm_to_vmem [thread:$0]  %s1, 16384, %s221, [#allocation7], 128, 128, 8
        $region16: #{tpu_custom_call.1} parent=11 // pred_fallthru
          _
        // Predicated region
        $region17: #{tpu_custom_call.1} parent=11 // pred_check
          %p227 = pneg %p89
        $region18: #{tpu_custom_call.1} parent=11 // pred_check_branch
          %229 = sbr.rel (%p227) target = $region20
        $region19: #{tpu_custom_call.1} parent=11 // pred_region
          %s231 = ssub.s32 12288, 12288
          %232 = vsyncadd [#allocation7], %s231
          %s233 = sshll.u32 [#allocation8], 4
          %s234 = int_to_ptr.vmem [resolvable:$true] %s233
          %239 = dma.hbm_to_vmem [thread:$0]  %s2, 12288, %s234, [#allocation7], 128, 128, 8
        $region20: #{tpu_custom_call.1} parent=11 // pred_fallthru
          _
        // Predicated region
        $region21: #{tpu_custom_call.1} parent=11 // pred_check
          %p240 = pneg %p110
        $region22: #{tpu_custom_call.1} parent=11 // pred_check_branch
          %242 = sbr.rel (%p240) target = $region24
        $region23: #{tpu_custom_call.1} parent=11 // pred_region
          %s244 = ssub.s32 16384, 16384
          %245 = vsyncadd [#allocation10], %s244
          %s246 = sshll.u32 [#allocation9], 4
          %s247 = int_to_ptr.vmem [resolvable:$true] %s246
          %252 = dma.hbm_to_vmem [thread:$0]  %s3, 16384, %s247, [#allocation10], 512, 512, 32
        $region24: #{tpu_custom_call.1} parent=11 // pred_fallthru
          _
        // Predicated region
        $region25: #{tpu_custom_call.1} parent=11 // pred_check
          %p253 = pneg %p131
        $region26: #{tpu_custom_call.1} parent=11 // pred_check_branch
          %255 = sbr.rel (%p253) target = $region28
        $region27: #{tpu_custom_call.1} parent=11 // pred_region
          _
        $region28: #{tpu_custom_call.1} parent=11 // pred_fallthru
          _
        // Predicated region
        $region29: #{tpu_custom_call.1} parent=11 // pred_check
          %p256 = pneg %p152
        $region30: #{tpu_custom_call.1} parent=11 // pred_check_branch
          %258 = sbr.rel (%p256) target = $region32
        $region31: #{tpu_custom_call.1} parent=11 // pred_region
          %s260 = ssub.s32 32, 32
          %261 = vsyncadd [#allocation10], %s260
          %s263 = sshll.u32 [#allocation11], 4
          %s264 = int_to_ptr.vmem [resolvable:$true] %s263
          %266 = dma.hbm_to_vmem [thread:$0]  %s5, 32, %s264, [#allocation10]
        $region32: #{tpu_custom_call.1} parent=11 // pred_fallthru
          _
        // Predicated region
        $region33: #{tpu_custom_call.1} parent=11 // pred_check
          %p267 = pneg %p173
        $region34: #{tpu_custom_call.1} parent=11 // pred_check_branch
          %269 = sbr.rel (%p267) target = $region36
        $region35: #{tpu_custom_call.1} parent=11 // pred_region
          _
        $region36: #{tpu_custom_call.1} parent=11 // pred_fallthru
          _
      $region12: #{tpu_custom_call.1} parent=5 // pred_fallthru
        _
      %p270 = scmp.lt.s32.totalorder %s21, 2
      // Predicated region
      $region37: #{tpu_custom_call.1} parent=5 // pred_check
        %p271 = pneg %p270
      $region38: #{tpu_custom_call.1} parent=5 // pred_check_branch
        %273 = sbr.rel (%p271) target = $region40
      $region39: #{tpu_custom_call.1} parent=5 // pred_region
        // Predicated region
        $region41: #{tpu_custom_call.1} parent=39 // pred_check
          %p274 = pneg %p41
        $region42: #{tpu_custom_call.1} parent=39 // pred_check_branch
          %276 = sbr.rel (%p274) target = $region44
        $region43: #{tpu_custom_call.1} parent=39 // pred_region
          %s277 = sand.u32 %s31, 1
          %s278 = scalar_lea.sflag [#allocation4], %s277
          %s279 = sand.u32 %s31, 1
          %s280 = smul.addr %s279, 128
          %s281 = scalar_lea.vmem [#allocation3], %s280
          %s283 = ssub.s32 2048, 2048
          %284 = vsyncadd %s278, %s283
          %s285 = smul.addr %s21, 16
          %s286 = smul.addr %s285, 128
          %s287 = scalar_lea.hbm %s0, %s286
          %s288 = sshll.u32 %s281, 4
          %s289 = int_to_ptr.vmem [resolvable:$true] %s288
          %294 = dma.hbm_to_vmem [thread:$0]  %s287, 2048, %s289, %s278, 1024, 1024, 64
        $region44: #{tpu_custom_call.1} parent=39 // pred_fallthru
          _
      $region40: #{tpu_custom_call.1} parent=5 // pred_fallthru
        _
      %p295 = scmp.le.s32.totalorder 1, %s21
      %p296 = scmp.lt.s32.totalorder %s21, 3
      %p297 = pnand %p295, %p296
      %p298 = pneg %p297
      // Predicated region
      $region45: #{tpu_custom_call.1} parent=5 // pred_check
        _
      $region46: #{tpu_custom_call.1} parent=5 // pred_check_branch
        %300 = sbr.rel (%p297) target = $region48
      $region47: #{tpu_custom_call.1} parent=5 // pred_region
        %s301 = ssub.s32 %s21, 1
        %s302 = sand.u32 %s34, 1
        %s303 = scalar_lea.sflag [#allocation4], %s302
        %s304 = sand.u32 %s34, 1
        %s305 = smul.addr %s304, 128
        %s306 = scalar_lea.vmem [#allocation3], %s305
        // Predicated region
        $region49: #{tpu_custom_call.1} parent=47 // pred_check
          %p307 = pneg %p47
        $region50: #{tpu_custom_call.1} parent=47 // pred_check_branch
          %309 = sbr.rel (%p307) target = $region52
        $region51: #{tpu_custom_call.1} parent=47 // pred_region
          %310 = dma.done %s303, 2048
        $region52: #{tpu_custom_call.1} parent=47 // pred_fallthru
          _
        // Predicated region
        $region53: #{tpu_custom_call.1} parent=47 // pred_check
          %p311 = pneg %p68
        $region54: #{tpu_custom_call.1} parent=47 // pred_check_branch
          %313 = sbr.rel (%p311) target = $region56
        $region55: #{tpu_custom_call.1} parent=47 // pred_region
          %314 = dma.done [#allocation7], 16384
        $region56: #{tpu_custom_call.1} parent=47 // pred_fallthru
          _
        // Predicated region
        $region57: #{tpu_custom_call.1} parent=47 // pred_check
          %p315 = pneg %p89
        $region58: #{tpu_custom_call.1} parent=47 // pred_check_branch
          %317 = sbr.rel (%p315) target = $region60
        $region59: #{tpu_custom_call.1} parent=47 // pred_region
          %318 = dma.done [#allocation7], 12288
        $region60: #{tpu_custom_call.1} parent=47 // pred_fallthru
          _
        // Predicated region
        $region61: #{tpu_custom_call.1} parent=47 // pred_check
          %p319 = pneg %p110
        $region62: #{tpu_custom_call.1} parent=47 // pred_check_branch
          %321 = sbr.rel (%p319) target = $region64
        $region63: #{tpu_custom_call.1} parent=47 // pred_region
          %322 = dma.done [#allocation10], 16384
        $region64: #{tpu_custom_call.1} parent=47 // pred_fallthru
          _
        // Predicated region
        $region65: #{tpu_custom_call.1} parent=47 // pred_check
          %p323 = pneg %p152
        $region66: #{tpu_custom_call.1} parent=47 // pred_check_branch
          %325 = sbr.rel (%p323) target = $region68
        $region67: #{tpu_custom_call.1} parent=47 // pred_region
          %326 = dma.done [#allocation10], 32
        $region68: #{tpu_custom_call.1} parent=47 // pred_fallthru
          _
        %s327 = sand.u32 %s34, 1
        %s328 = scalar_lea.sflag [#allocation4], %s327
        %s329 = sand.u32 %s34, 1
        %s330 = smul.addr %s329, 128
        %s331 = scalar_lea.vmem [#allocation3], %s330
        %p332 = pneg %p47
        %p333 = pneg %p44
        %p334 = pneg %p68
        %p335 = pneg %p65
        %p336 = pneg %p89
        %p337 = pneg %p86
        %p338 = pneg %p110
        %p339 = pneg %p107
        %p340 = pneg %p131
        %p341 = pneg %p128
        %p342 = pneg %p152
        %p343 = pneg %p149
        %p344 = pneg %p173
        %p345 = pneg %p170
        %p346 = pneg %p199
        %p347 = pneg %p196
        %s348 = sand.u32 %s186, 1
        %s349 = scalar_lea.sflag [#allocation5], %s348
        %s350 = sand.u32 %s186, 1
        %s351 = smul.addr %s350, 128
        %s352 = scalar_lea.vmem [#allocation12], %s351
        %v353 = vld [vmem:[%s306] sm:$0xff]
        %v354 = vld [vmem:[%s306 + $0x8] sm:$0xff]
        %v355 = vld [vmem:[%s306 + $0x10] sm:$0xff]
        %v356 = vld [vmem:[%s306 + $0x18] sm:$0xff]
        %v357 = vld [vmem:[%s306 + $0x20] sm:$0xff]
        %v358 = vld [vmem:[%s306 + $0x28] sm:$0xff]
        %v359 = vld [vmem:[%s306 + $0x30] sm:$0xff]
        %v360 = vld [vmem:[%s306 + $0x38] sm:$0xff]
        %v361 = vld [vmem:[%s306 + $0x40] sm:$0xff]
        %v362 = vld [vmem:[%s306 + $0x48] sm:$0xff]
        %v363 = vld [vmem:[%s306 + $0x50] sm:$0xff]
        %v364 = vld [vmem:[%s306 + $0x58] sm:$0xff]
        %v365 = vld [vmem:[%s306 + $0x60] sm:$0xff]
        %v366 = vld [vmem:[%s306 + $0x68] sm:$0xff]
        %v367 = vld [vmem:[%s306 + $0x70] sm:$0xff]
        %v368 = vld [vmem:[%s306 + $0x78] sm:$0xff]
        %v369 = vpack.c.bf16 %v361, %v353
        %v370 = vpack.c.bf16 %v362, %v354
        %v371 = vpack.c.bf16 %v363, %v355
        %v372 = vpack.c.bf16 %v364, %v356
        %v373 = vpack.c.bf16 %v365, %v357
        %v374 = vpack.c.bf16 %v366, %v358
        %v375 = vpack.c.bf16 %v367, %v359
        %v376 = vpack.c.bf16 %v368, %v360
        %v377 = vld [vmem:[#allocation6] sm:$0xff]
        %v378 = vld [vmem:[#allocation6 + $0x8] sm:$0xff]
        %v379 = vld [vmem:[#allocation6 + $0x10] sm:$0xff]
        %v380 = vld [vmem:[#allocation6 + $0x18] sm:$0xff]
        %v381 = vld [vmem:[#allocation6 + $0x20] sm:$0xff]
        %v382 = vld [vmem:[#allocation6 + $0x28] sm:$0xff]
        %v383 = vld [vmem:[#allocation6 + $0x30] sm:$0xff]
        %v384 = vld [vmem:[#allocation6 + $0x38] sm:$0xff]
        %v385 = vld [vmem:[#allocation6 + $0x40] sm:$0xff]
        %v386 = vld [vmem:[#allocation6 + $0x48] sm:$0xff]
        %v387 = vld [vmem:[#allocation6 + $0x50] sm:$0xff]
        %v388 = vld [vmem:[#allocation6 + $0x58] sm:$0xff]
        %v389 = vld [vmem:[#allocation6 + $0x60] sm:$0xff]
        %v390 = vld [vmem:[#allocation6 + $0x68] sm:$0xff]
        %v391 = vld [vmem:[#allocation6 + $0x70] sm:$0xff]
        %v392 = vld [vmem:[#allocation6 + $0x78] sm:$0xff]
        %v393 = vld [vmem:[#allocation6 + $0x80] sm:$0xff]
        %v394 = vld [vmem:[#allocation6 + $0x88] sm:$0xff]
        %v395 = vld [vmem:[#allocation6 + $0x90] sm:$0xff]
        %v396 = vld [vmem:[#allocation6 + $0x98] sm:$0xff]
        %v397 = vld [vmem:[#allocation6 + $0xa0] sm:$0xff]
        %v398 = vld [vmem:[#allocation6 + $0xa8] sm:$0xff]
        %v399 = vld [vmem:[#allocation6 + $0xb0] sm:$0xff]
        %v400 = vld [vmem:[#allocation6 + $0xb8] sm:$0xff]
        %v401 = vld [vmem:[#allocation6 + $0xc0] sm:$0xff]
        %v402 = vld [vmem:[#allocation6 + $0xc8] sm:$0xff]
        %v403 = vld [vmem:[#allocation6 + $0xd0] sm:$0xff]
        %v404 = vld [vmem:[#allocation6 + $0xd8] sm:$0xff]
        %v405 = vld [vmem:[#allocation6 + $0xe0] sm:$0xff]
        %v406 = vld [vmem:[#allocation6 + $0xe8] sm:$0xff]
        %v407 = vld [vmem:[#allocation6 + $0xf0] sm:$0xff]
        %v408 = vld [vmem:[#allocation6 + $0xf8] sm:$0xff]
        %v409 = vld [vmem:[#allocation6 + $0x100] sm:$0xff]
        %v410 = vld [vmem:[#allocation6 + $0x108] sm:$0xff]
        %v411 = vld [vmem:[#allocation6 + $0x110] sm:$0xff]
        %v412 = vld [vmem:[#allocation6 + $0x118] sm:$0xff]
        %v413 = vld [vmem:[#allocation6 + $0x120] sm:$0xff]
        %v414 = vld [vmem:[#allocation6 + $0x128] sm:$0xff]
        %v415 = vld [vmem:[#allocation6 + $0x130] sm:$0xff]
        %v416 = vld [vmem:[#allocation6 + $0x138] sm:$0xff]
        %v417 = vld [vmem:[#allocation6 + $0x140] sm:$0xff]
        %v418 = vld [vmem:[#allocation6 + $0x148] sm:$0xff]
        %v419 = vld [vmem:[#allocation6 + $0x150] sm:$0xff]
        %v420 = vld [vmem:[#allocation6 + $0x158] sm:$0xff]
        %v421 = vld [vmem:[#allocation6 + $0x160] sm:$0xff]
        %v422 = vld [vmem:[#allocation6 + $0x168] sm:$0xff]
        %v423 = vld [vmem:[#allocation6 + $0x170] sm:$0xff]
        %v424 = vld [vmem:[#allocation6 + $0x178] sm:$0xff]
        %v425 = vld [vmem:[#allocation6 + $0x180] sm:$0xff]
        %v426 = vld [vmem:[#allocation6 + $0x188] sm:$0xff]
        %v427 = vld [vmem:[#allocation6 + $0x190] sm:$0xff]
        %v428 = vld [vmem:[#allocation6 + $0x198] sm:$0xff]
        %v429 = vld [vmem:[#allocation6 + $0x1a0] sm:$0xff]
        %v430 = vld [vmem:[#allocation6 + $0x1a8] sm:$0xff]
        %v431 = vld [vmem:[#allocation6 + $0x1b0] sm:$0xff]
        %v432 = vld [vmem:[#allocation6 + $0x1b8] sm:$0xff]
        %v433 = vld [vmem:[#allocation6 + $0x1c0] sm:$0xff]
        %v434 = vld [vmem:[#allocation6 + $0x1c8] sm:$0xff]
        %v435 = vld [vmem:[#allocation6 + $0x1d0] sm:$0xff]
        %v436 = vld [vmem:[#allocation6 + $0x1d8] sm:$0xff]
        %v437 = vld [vmem:[#allocation6 + $0x1e0] sm:$0xff]
        %v438 = vld [vmem:[#allocation6 + $0x1e8] sm:$0xff]
        %v439 = vld [vmem:[#allocation6 + $0x1f0] sm:$0xff]
        %v440 = vld [vmem:[#allocation6 + $0x1f8] sm:$0xff]
        %v441 = vld [vmem:[#allocation6 + $0x200] sm:$0xff]
        %v442 = vld [vmem:[#allocation6 + $0x208] sm:$0xff]
        %v443 = vld [vmem:[#allocation6 + $0x210] sm:$0xff]
        %v444 = vld [vmem:[#allocation6 + $0x218] sm:$0xff]
        %v445 = vld [vmem:[#allocation6 + $0x220] sm:$0xff]
        %v446 = vld [vmem:[#allocation6 + $0x228] sm:$0xff]
        %v447 = vld [vmem:[#allocation6 + $0x230] sm:$0xff]
        %v448 = vld [vmem:[#allocation6 + $0x238] sm:$0xff]
        %v449 = vld [vmem:[#allocation6 + $0x240] sm:$0xff]
        %v450 = vld [vmem:[#allocation6 + $0x248] sm:$0xff]
        %v451 = vld [vmem:[#allocation6 + $0x250] sm:$0xff]
        %v452 = vld [vmem:[#allocation6 + $0x258] sm:$0xff]
        %v453 = vld [vmem:[#allocation6 + $0x260] sm:$0xff]
        %v454 = vld [vmem:[#allocation6 + $0x268] sm:$0xff]
        %v455 = vld [vmem:[#allocation6 + $0x270] sm:$0xff]
        %v456 = vld [vmem:[#allocation6 + $0x278] sm:$0xff]
        %v457 = vld [vmem:[#allocation6 + $0x280] sm:$0xff]
        %v458 = vld [vmem:[#allocation6 + $0x288] sm:$0xff]
        %v459 = vld [vmem:[#allocation6 + $0x290] sm:$0xff]
        %v460 = vld [vmem:[#allocation6 + $0x298] sm:$0xff]
        %v461 = vld [vmem:[#allocation6 + $0x2a0] sm:$0xff]
        %v462 = vld [vmem:[#allocation6 + $0x2a8] sm:$0xff]
        %v463 = vld [vmem:[#allocation6 + $0x2b0] sm:$0xff]
        %v464 = vld [vmem:[#allocation6 + $0x2b8] sm:$0xff]
        %v465 = vld [vmem:[#allocation6 + $0x2c0] sm:$0xff]
        %v466 = vld [vmem:[#allocation6 + $0x2c8] sm:$0xff]
        %v467 = vld [vmem:[#allocation6 + $0x2d0] sm:$0xff]
        %v468 = vld [vmem:[#allocation6 + $0x2d8] sm:$0xff]
        %v469 = vld [vmem:[#allocation6 + $0x2e0] sm:$0xff]
        %v470 = vld [vmem:[#allocation6 + $0x2e8] sm:$0xff]
        %v471 = vld [vmem:[#allocation6 + $0x2f0] sm:$0xff]
        %v472 = vld [vmem:[#allocation6 + $0x2f8] sm:$0xff]
        %v473 = vld [vmem:[#allocation6 + $0x300] sm:$0xff]
        %v474 = vld [vmem:[#allocation6 + $0x308] sm:$0xff]
        %v475 = vld [vmem:[#allocation6 + $0x310] sm:$0xff]
        %v476 = vld [vmem:[#allocation6 + $0x318] sm:$0xff]
        %v477 = vld [vmem:[#allocation6 + $0x320] sm:$0xff]
        %v478 = vld [vmem:[#allocation6 + $0x328] sm:$0xff]
        %v479 = vld [vmem:[#allocation6 + $0x330] sm:$0xff]
        %v480 = vld [vmem:[#allocation6 + $0x338] sm:$0xff]
        %v481 = vld [vmem:[#allocation6 + $0x340] sm:$0xff]
        %v482 = vld [vmem:[#allocation6 + $0x348] sm:$0xff]
        %v483 = vld [vmem:[#allocation6 + $0x350] sm:$0xff]
        %v484 = vld [vmem:[#allocation6 + $0x358] sm:$0xff]
        %v485 = vld [vmem:[#allocation6 + $0x360] sm:$0xff]
        %v486 = vld [vmem:[#allocation6 + $0x368] sm:$0xff]
        %v487 = vld [vmem:[#allocation6 + $0x370] sm:$0xff]
        %v488 = vld [vmem:[#allocation6 + $0x378] sm:$0xff]
        %v489 = vld [vmem:[#allocation6 + $0x380] sm:$0xff]
        %v490 = vld [vmem:[#allocation6 + $0x388] sm:$0xff]
        %v491 = vld [vmem:[#allocation6 + $0x390] sm:$0xff]
        %v492 = vld [vmem:[#allocation6 + $0x398] sm:$0xff]
        %v493 = vld [vmem:[#allocation6 + $0x3a0] sm:$0xff]
        %v494 = vld [vmem:[#allocation6 + $0x3a8] sm:$0xff]
        %v495 = vld [vmem:[#allocation6 + $0x3b0] sm:$0xff]
        %v496 = vld [vmem:[#allocation6 + $0x3b8] sm:$0xff]
        %v497 = vld [vmem:[#allocation6 + $0x3c0] sm:$0xff]
        %v498 = vld [vmem:[#allocation6 + $0x3c8] sm:$0xff]
        %v499 = vld [vmem:[#allocation6 + $0x3d0] sm:$0xff]
        %v500 = vld [vmem:[#allocation6 + $0x3d8] sm:$0xff]
        %v501 = vld [vmem:[#allocation6 + $0x3e0] sm:$0xff]
        %v502 = vld [vmem:[#allocation6 + $0x3e8] sm:$0xff]
        %v503 = vld [vmem:[#allocation6 + $0x3f0] sm:$0xff]
        %v504 = vld [vmem:[#allocation6 + $0x3f8] sm:$0xff]
        %v505 = vld [vmem:[%s4] sm:$0x3]
        %v507 = vlaneseq
        %v508 = vshrl.u32 %v507, 7
        %v509 = vsub.s32 0, %v508
        %v510 = vrot.slane %v505, %v509
        %v511 = vlaneseq
        %v512 = vshrl.u32 %v511, 7
        %v513 = vsub.s32 1, %v512
        %v514 = vrot.slane %v505, %v513
        %v645 = vunpack.c.l.b16 %v377
        %v646 = vunpack.c.h.b16 %v377
        %v647 = vunpack.c.l.b16 %v378
        %v648 = vunpack.c.h.b16 %v378
        %v649 = vunpack.c.l.b16 %v379
        %v650 = vunpack.c.h.b16 %v379
        %v651 = vunpack.c.l.b16 %v380
        %v652 = vunpack.c.h.b16 %v380
        %v653 = vunpack.c.l.b16 %v381
        %v654 = vunpack.c.h.b16 %v381
        %v655 = vunpack.c.l.b16 %v382
        %v656 = vunpack.c.h.b16 %v382
        %v657 = vunpack.c.l.b16 %v383
        %v658 = vunpack.c.h.b16 %v383
        %v659 = vunpack.c.l.b16 %v384
        %v660 = vunpack.c.h.b16 %v384
        %v661 = vunpack.c.l.b16 %v385
        %v662 = vunpack.c.h.b16 %v385
        %v663 = vunpack.c.l.b16 %v386
        %v664 = vunpack.c.h.b16 %v386
        %v665 = vunpack.c.l.b16 %v387
        %v666 = vunpack.c.h.b16 %v387
        %v667 = vunpack.c.l.b16 %v388
        %v668 = vunpack.c.h.b16 %v388
        %v669 = vunpack.c.l.b16 %v389
        %v670 = vunpack.c.h.b16 %v389
        %v671 = vunpack.c.l.b16 %v390
        %v672 = vunpack.c.h.b16 %v390
        %v673 = vunpack.c.l.b16 %v391
        %v674 = vunpack.c.h.b16 %v391
        %v675 = vunpack.c.l.b16 %v392
        %v676 = vunpack.c.h.b16 %v392
        %v677 = vunpack.c.l.b16 %v393
        %v678 = vunpack.c.h.b16 %v393
        %v679 = vunpack.c.l.b16 %v394
        %v680 = vunpack.c.h.b16 %v394
        %v681 = vunpack.c.l.b16 %v395
        %v682 = vunpack.c.h.b16 %v395
        %v683 = vunpack.c.l.b16 %v396
        %v684 = vunpack.c.h.b16 %v396
        %v685 = vunpack.c.l.b16 %v397
        %v686 = vunpack.c.h.b16 %v397
        %v687 = vunpack.c.l.b16 %v398
        %v688 = vunpack.c.h.b16 %v398
        %v689 = vunpack.c.l.b16 %v399
        %v690 = vunpack.c.h.b16 %v399
        %v691 = vunpack.c.l.b16 %v400
        %v692 = vunpack.c.h.b16 %v400
        %v693 = vunpack.c.l.b16 %v401
        %v694 = vunpack.c.h.b16 %v401
        %v695 = vunpack.c.l.b16 %v402
        %v696 = vunpack.c.h.b16 %v402
        %v697 = vunpack.c.l.b16 %v403
        %v698 = vunpack.c.h.b16 %v403
        %v699 = vunpack.c.l.b16 %v404
        %v700 = vunpack.c.h.b16 %v404
        %v701 = vunpack.c.l.b16 %v405
        %v702 = vunpack.c.h.b16 %v405
        %v703 = vunpack.c.l.b16 %v406
        %v704 = vunpack.c.h.b16 %v406
        %v705 = vunpack.c.l.b16 %v407
        %v706 = vunpack.c.h.b16 %v407
        %v707 = vunpack.c.l.b16 %v408
        %v708 = vunpack.c.h.b16 %v408
        %v709 = vunpack.c.l.b16 %v409
        %v710 = vunpack.c.h.b16 %v409
        %v711 = vunpack.c.l.b16 %v410
        %v712 = vunpack.c.h.b16 %v410
        %v713 = vunpack.c.l.b16 %v411
        %v714 = vunpack.c.h.b16 %v411
        %v715 = vunpack.c.l.b16 %v412
        %v716 = vunpack.c.h.b16 %v412
        %v717 = vunpack.c.l.b16 %v413
        %v718 = vunpack.c.h.b16 %v413
        %v719 = vunpack.c.l.b16 %v414
        %v720 = vunpack.c.h.b16 %v414
        %v721 = vunpack.c.l.b16 %v415
        %v722 = vunpack.c.h.b16 %v415
        %v723 = vunpack.c.l.b16 %v416
        %v724 = vunpack.c.h.b16 %v416
        %v725 = vunpack.c.l.b16 %v417
        %v726 = vunpack.c.h.b16 %v417
        %v727 = vunpack.c.l.b16 %v418
        %v728 = vunpack.c.h.b16 %v418
        %v729 = vunpack.c.l.b16 %v419
        %v730 = vunpack.c.h.b16 %v419
        %v731 = vunpack.c.l.b16 %v420
        %v732 = vunpack.c.h.b16 %v420
        %v733 = vunpack.c.l.b16 %v421
        %v734 = vunpack.c.h.b16 %v421
        %v735 = vunpack.c.l.b16 %v422
        %v736 = vunpack.c.h.b16 %v422
        %v737 = vunpack.c.l.b16 %v423
        %v738 = vunpack.c.h.b16 %v423
        %v739 = vunpack.c.l.b16 %v424
        %v740 = vunpack.c.h.b16 %v424
        %v741 = vunpack.c.l.b16 %v425
        %v742 = vunpack.c.h.b16 %v425
        %v743 = vunpack.c.l.b16 %v426
        %v744 = vunpack.c.h.b16 %v426
        %v745 = vunpack.c.l.b16 %v427
        %v746 = vunpack.c.h.b16 %v427
        %v747 = vunpack.c.l.b16 %v428
        %v748 = vunpack.c.h.b16 %v428
        %v749 = vunpack.c.l.b16 %v429
        %v750 = vunpack.c.h.b16 %v429
        %v751 = vunpack.c.l.b16 %v430
        %v752 = vunpack.c.h.b16 %v430
        %v753 = vunpack.c.l.b16 %v431
        %v754 = vunpack.c.h.b16 %v431
        %v755 = vunpack.c.l.b16 %v432
        %v756 = vunpack.c.h.b16 %v432
        %v757 = vunpack.c.l.b16 %v433
        %v758 = vunpack.c.h.b16 %v433
        %v759 = vunpack.c.l.b16 %v434
        %v760 = vunpack.c.h.b16 %v434
        %v761 = vunpack.c.l.b16 %v435
        %v762 = vunpack.c.h.b16 %v435
        %v763 = vunpack.c.l.b16 %v436
        %v764 = vunpack.c.h.b16 %v436
        %v765 = vunpack.c.l.b16 %v437
        %v766 = vunpack.c.h.b16 %v437
        %v767 = vunpack.c.l.b16 %v438
        %v768 = vunpack.c.h.b16 %v438
        %v769 = vunpack.c.l.b16 %v439
        %v770 = vunpack.c.h.b16 %v439
        %v771 = vunpack.c.l.b16 %v440
        %v772 = vunpack.c.h.b16 %v440
        %v773 = vunpack.c.l.b16 %v441
        %v774 = vunpack.c.h.b16 %v441
        %v775 = vunpack.c.l.b16 %v442
        %v776 = vunpack.c.h.b16 %v442
        %v777 = vunpack.c.l.b16 %v443
        %v778 = vunpack.c.h.b16 %v443
        %v779 = vunpack.c.l.b16 %v444
        %v780 = vunpack.c.h.b16 %v444
        %v781 = vunpack.c.l.b16 %v445
        %v782 = vunpack.c.h.b16 %v445
        %v783 = vunpack.c.l.b16 %v446
        %v784 = vunpack.c.h.b16 %v446
        %v785 = vunpack.c.l.b16 %v447
        %v786 = vunpack.c.h.b16 %v447
        %v787 = vunpack.c.l.b16 %v448
        %v788 = vunpack.c.h.b16 %v448
        %v789 = vunpack.c.l.b16 %v449
        %v790 = vunpack.c.h.b16 %v449
        %v791 = vunpack.c.l.b16 %v450
        %v792 = vunpack.c.h.b16 %v450
        %v793 = vunpack.c.l.b16 %v451
        %v794 = vunpack.c.h.b16 %v451
        %v795 = vunpack.c.l.b16 %v452
        %v796 = vunpack.c.h.b16 %v452
        %v797 = vunpack.c.l.b16 %v453
        %v798 = vunpack.c.h.b16 %v453
        %v799 = vunpack.c.l.b16 %v454
        %v800 = vunpack.c.h.b16 %v454
        %v801 = vunpack.c.l.b16 %v455
        %v802 = vunpack.c.h.b16 %v455
        %v803 = vunpack.c.l.b16 %v456
        %v804 = vunpack.c.h.b16 %v456
        %v805 = vunpack.c.l.b16 %v457
        %v806 = vunpack.c.h.b16 %v457
        %v807 = vunpack.c.l.b16 %v458
        %v808 = vunpack.c.h.b16 %v458
        %v809 = vunpack.c.l.b16 %v459
        %v810 = vunpack.c.h.b16 %v459
        %v811 = vunpack.c.l.b16 %v460
        %v812 = vunpack.c.h.b16 %v460
        %v813 = vunpack.c.l.b16 %v461
        %v814 = vunpack.c.h.b16 %v461
        %v815 = vunpack.c.l.b16 %v462
        %v816 = vunpack.c.h.b16 %v462
        %v817 = vunpack.c.l.b16 %v463
        %v818 = vunpack.c.h.b16 %v463
        %v819 = vunpack.c.l.b16 %v464
        %v820 = vunpack.c.h.b16 %v464
        %v821 = vunpack.c.l.b16 %v465
        %v822 = vunpack.c.h.b16 %v465
        %v823 = vunpack.c.l.b16 %v466
        %v824 = vunpack.c.h.b16 %v466
        %v825 = vunpack.c.l.b16 %v467
        %v826 = vunpack.c.h.b16 %v467
        %v827 = vunpack.c.l.b16 %v468
        %v828 = vunpack.c.h.b16 %v468
        %v829 = vunpack.c.l.b16 %v469
        %v830 = vunpack.c.h.b16 %v469
        %v831 = vunpack.c.l.b16 %v470
        %v832 = vunpack.c.h.b16 %v470
        %v833 = vunpack.c.l.b16 %v471
        %v834 = vunpack.c.h.b16 %v471
        %v835 = vunpack.c.l.b16 %v472
        %v836 = vunpack.c.h.b16 %v472
        %v837 = vunpack.c.l.b16 %v473
        %v838 = vunpack.c.h.b16 %v473
        %v839 = vunpack.c.l.b16 %v474
        %v840 = vunpack.c.h.b16 %v474
        %v841 = vunpack.c.l.b16 %v475
        %v842 = vunpack.c.h.b16 %v475
        %v843 = vunpack.c.l.b16 %v476
        %v844 = vunpack.c.h.b16 %v476
        %v845 = vunpack.c.l.b16 %v477
        %v846 = vunpack.c.h.b16 %v477
        %v847 = vunpack.c.l.b16 %v478
        %v848 = vunpack.c.h.b16 %v478
        %v849 = vunpack.c.l.b16 %v479
        %v850 = vunpack.c.h.b16 %v479
        %v851 = vunpack.c.l.b16 %v480
        %v852 = vunpack.c.h.b16 %v480
        %v853 = vunpack.c.l.b16 %v481
        %v854 = vunpack.c.h.b16 %v481
        %v855 = vunpack.c.l.b16 %v482
        %v856 = vunpack.c.h.b16 %v482
        %v857 = vunpack.c.l.b16 %v483
        %v858 = vunpack.c.h.b16 %v483
        %v859 = vunpack.c.l.b16 %v484
        %v860 = vunpack.c.h.b16 %v484
        %v861 = vunpack.c.l.b16 %v485
        %v862 = vunpack.c.h.b16 %v485
        %v863 = vunpack.c.l.b16 %v486
        %v864 = vunpack.c.h.b16 %v486
        %v865 = vunpack.c.l.b16 %v487
        %v866 = vunpack.c.h.b16 %v487
        %v867 = vunpack.c.l.b16 %v488
        %v868 = vunpack.c.h.b16 %v488
        %v869 = vunpack.c.l.b16 %v489
        %v870 = vunpack.c.h.b16 %v489
        %v871 = vunpack.c.l.b16 %v490
        %v872 = vunpack.c.h.b16 %v490
        %v873 = vunpack.c.l.b16 %v491
        %v874 = vunpack.c.h.b16 %v491
        %v875 = vunpack.c.l.b16 %v492
        %v876 = vunpack.c.h.b16 %v492
        %v877 = vunpack.c.l.b16 %v493
        %v878 = vunpack.c.h.b16 %v493
        %v879 = vunpack.c.l.b16 %v494
        %v880 = vunpack.c.h.b16 %v494
        %v881 = vunpack.c.l.b16 %v495
        %v882 = vunpack.c.h.b16 %v495
        %v883 = vunpack.c.l.b16 %v496
        %v884 = vunpack.c.h.b16 %v496
        %v885 = vunpack.c.l.b16 %v497
        %v886 = vunpack.c.h.b16 %v497
        %v887 = vunpack.c.l.b16 %v498
        %v888 = vunpack.c.h.b16 %v498
        %v889 = vunpack.c.l.b16 %v499
        %v890 = vunpack.c.h.b16 %v499
        %v891 = vunpack.c.l.b16 %v500
        %v892 = vunpack.c.h.b16 %v500
        %v893 = vunpack.c.l.b16 %v501
        %v894 = vunpack.c.h.b16 %v501
        %v895 = vunpack.c.l.b16 %v502
        %v896 = vunpack.c.h.b16 %v502
        %v897 = vunpack.c.l.b16 %v503
        %v898 = vunpack.c.h.b16 %v503
        %v899 = vunpack.c.l.b16 %v504
        %v900 = vunpack.c.h.b16 %v504
        %v901 = vpack.c.b16 %v647, %v645
        %v902 = vpack.c.b16 %v648, %v646
        %v903 = vpack.c.b16 %v651, %v649
        %v904 = vpack.c.b16 %v652, %v650
        %v905 = vpack.c.b16 %v655, %v653
        %v906 = vpack.c.b16 %v656, %v654
        %v907 = vpack.c.b16 %v659, %v657
        %v908 = vpack.c.b16 %v660, %v658
        %v909 = vpack.c.b16 %v663, %v661
        %v910 = vpack.c.b16 %v664, %v662
        %v911 = vpack.c.b16 %v667, %v665
        %v912 = vpack.c.b16 %v668, %v666
        %v913 = vpack.c.b16 %v671, %v669
        %v914 = vpack.c.b16 %v672, %v670
        %v915 = vpack.c.b16 %v675, %v673
        %v916 = vpack.c.b16 %v676, %v674
        %v917 = vpack.c.b16 %v679, %v677
        %v918 = vpack.c.b16 %v680, %v678
        %v919 = vpack.c.b16 %v683, %v681
        %v920 = vpack.c.b16 %v684, %v682
        %v921 = vpack.c.b16 %v687, %v685
        %v922 = vpack.c.b16 %v688, %v686
        %v923 = vpack.c.b16 %v691, %v689
        %v924 = vpack.c.b16 %v692, %v690
        %v925 = vpack.c.b16 %v695, %v693
        %v926 = vpack.c.b16 %v696, %v694
        %v927 = vpack.c.b16 %v699, %v697
        %v928 = vpack.c.b16 %v700, %v698
        %v929 = vpack.c.b16 %v703, %v701
        %v930 = vpack.c.b16 %v704, %v702
        %v931 = vpack.c.b16 %v707, %v705
        %v932 = vpack.c.b16 %v708, %v706
        %v933 = vpack.c.b16 %v711, %v709
        %v934 = vpack.c.b16 %v712, %v710
        %v935 = vpack.c.b16 %v715, %v713
        %v936 = vpack.c.b16 %v716, %v714
        %v937 = vpack.c.b16 %v719, %v717
        %v938 = vpack.c.b16 %v720, %v718
        %v939 = vpack.c.b16 %v723, %v721
        %v940 = vpack.c.b16 %v724, %v722
        %v941 = vpack.c.b16 %v727, %v725
        %v942 = vpack.c.b16 %v728, %v726
        %v943 = vpack.c.b16 %v731, %v729
        %v944 = vpack.c.b16 %v732, %v730
        %v945 = vpack.c.b16 %v735, %v733
        %v946 = vpack.c.b16 %v736, %v734
        %v947 = vpack.c.b16 %v739, %v737
        %v948 = vpack.c.b16 %v740, %v738
        %v949 = vpack.c.b16 %v743, %v741
        %v950 = vpack.c.b16 %v744, %v742
        %v951 = vpack.c.b16 %v747, %v745
        %v952 = vpack.c.b16 %v748, %v746
        %v953 = vpack.c.b16 %v751, %v749
        %v954 = vpack.c.b16 %v752, %v750
        %v955 = vpack.c.b16 %v755, %v753
        %v956 = vpack.c.b16 %v756, %v754
        %v957 = vpack.c.b16 %v759, %v757
        %v958 = vpack.c.b16 %v760, %v758
        %v959 = vpack.c.b16 %v763, %v761
        %v960 = vpack.c.b16 %v764, %v762
        %v961 = vpack.c.b16 %v767, %v765
        %v962 = vpack.c.b16 %v768, %v766
        %v963 = vpack.c.b16 %v771, %v769
        %v964 = vpack.c.b16 %v772, %v770
        %v965 = vpack.c.b16 %v775, %v773
        %v966 = vpack.c.b16 %v776, %v774
        %v967 = vpack.c.b16 %v779, %v777
        %v968 = vpack.c.b16 %v780, %v778
        %v969 = vpack.c.b16 %v783, %v781
        %v970 = vpack.c.b16 %v784, %v782
        %v971 = vpack.c.b16 %v787, %v785
        %v972 = vpack.c.b16 %v788, %v786
        %v973 = vpack.c.b16 %v791, %v789
        %v974 = vpack.c.b16 %v792, %v790
        %v975 = vpack.c.b16 %v795, %v793
        %v976 = vpack.c.b16 %v796, %v794
        %v977 = vpack.c.b16 %v799, %v797
        %v978 = vpack.c.b16 %v800, %v798
        %v979 = vpack.c.b16 %v803, %v801
        %v980 = vpack.c.b16 %v804, %v802
        %v981 = vpack.c.b16 %v807, %v805
        %v982 = vpack.c.b16 %v808, %v806
        %v983 = vpack.c.b16 %v811, %v809
        %v984 = vpack.c.b16 %v812, %v810
        %v985 = vpack.c.b16 %v815, %v813
        %v986 = vpack.c.b16 %v816, %v814
        %v987 = vpack.c.b16 %v819, %v817
        %v988 = vpack.c.b16 %v820, %v818
        %v989 = vpack.c.b16 %v823, %v821
        %v990 = vpack.c.b16 %v824, %v822
        %v991 = vpack.c.b16 %v827, %v825
        %v992 = vpack.c.b16 %v828, %v826
        %v993 = vpack.c.b16 %v831, %v829
        %v994 = vpack.c.b16 %v832, %v830
        %v995 = vpack.c.b16 %v835, %v833
        %v996 = vpack.c.b16 %v836, %v834
        %v997 = vpack.c.b16 %v839, %v837
        %v998 = vpack.c.b16 %v840, %v838
        %v999 = vpack.c.b16 %v843, %v841
        %v1000 = vpack.c.b16 %v844, %v842
        %v1001 = vpack.c.b16 %v847, %v845
        %v1002 = vpack.c.b16 %v848, %v846
        %v1003 = vpack.c.b16 %v851, %v849
        %v1004 = vpack.c.b16 %v852, %v850
        %v1005 = vpack.c.b16 %v855, %v853
        %v1006 = vpack.c.b16 %v856, %v854
        %v1007 = vpack.c.b16 %v859, %v857
        %v1008 = vpack.c.b16 %v860, %v858
        %v1009 = vpack.c.b16 %v863, %v861
        %v1010 = vpack.c.b16 %v864, %v862
        %v1011 = vpack.c.b16 %v867, %v865
        %v1012 = vpack.c.b16 %v868, %v866
        %v1013 = vpack.c.b16 %v871, %v869
        %v1014 = vpack.c.b16 %v872, %v870
        %v1015 = vpack.c.b16 %v875, %v873
        %v1016 = vpack.c.b16 %v876, %v874
        %v1017 = vpack.c.b16 %v879, %v877
        %v1018 = vpack.c.b16 %v880, %v878
        %v1019 = vpack.c.b16 %v883, %v881
        %v1020 = vpack.c.b16 %v884, %v882
        %v1021 = vpack.c.b16 %v887, %v885
        %v1022 = vpack.c.b16 %v888, %v886
        %v1023 = vpack.c.b16 %v891, %v889
        %v1024 = vpack.c.b16 %v892, %v890
        %v1025 = vpack.c.b16 %v895, %v893
        %v1026 = vpack.c.b16 %v896, %v894
        %v1027 = vpack.c.b16 %v899, %v897
        %v1028 = vpack.c.b16 %v900, %v898
        %1157 = vmatprep.subr.bf16.mxu0 %v916
        %1158 = vmatpush1.bf16.msra.mxu0 %v915
        %1159 = vmatprep.subr.bf16.mxu0 %v914
        %1160 = vmatpush1.bf16.msra.mxu0 %v913
        %1161 = vmatprep.subr.bf16.mxu0 %v912
        %1162 = vmatpush1.bf16.msra.mxu0 %v911
        %1163 = vmatprep.subr.bf16.mxu0 %v910
        %1164 = vmatpush1.bf16.msra.mxu0 %v909
        %1165 = vmatprep.subr.bf16.mxu0 %v908
        %1166 = vmatpush1.bf16.msra.mxu0 %v907
        %1167 = vmatprep.subr.bf16.mxu0 %v906
        %1168 = vmatpush1.bf16.msra.mxu0 %v905
        %1169 = vmatprep.subr.bf16.mxu0 %v904
        %1170 = vmatpush1.bf16.msra.mxu0 %v903
        %1171 = vmatprep.subr.bf16.mxu0 %v902
        %1172 = vmatpush1.bf16.msra.mxu0 %v901
        %1173 = vmatprep.subr.bf16.mxu0 %v932
        %1174 = vmatpush2.bf16.msra.mxu0 %v931
        %1175 = vmatprep.subr.bf16.mxu0 %v930
        %1176 = vmatpush2.bf16.msra.mxu0 %v929
        %1177 = vmatprep.subr.bf16.mxu0 %v928
        %1178 = vmatpush2.bf16.msra.mxu0 %v927
        %1179 = vmatprep.subr.bf16.mxu0 %v926
        %1180 = vmatpush2.bf16.msra.mxu0 %v925
        %1181 = vmatprep.subr.bf16.mxu0 %v924
        %1182 = vmatpush2.bf16.msra.mxu0 %v923
        %1183 = vmatprep.subr.bf16.mxu0 %v922
        %1184 = vmatpush2.bf16.msra.mxu0 %v921
        %1185 = vmatprep.subr.bf16.mxu0 %v920
        %1186 = vmatpush2.bf16.msra.mxu0 %v919
        %1187 = vmatprep.subr.bf16.mxu0 %v918
        %1188 = vmatpush2.bf16.msra.mxu0 %v917
        %1189 = vmatprep.mubr.bf16.mxu0 %v370
        %1190 = vmatmul.mubr.bf16.gmra.mxu0 %v369
        %v1191 = vpop.f32.mrf.mxu0
        %v1192 = vadd.f32 %v510, %v1191
        %v1193 = vpop.f32.mrf.mxu0
        %v1194 = vadd.f32 %v514, %v1193
        %v1195 = vpop.f32.mrf.mxu0
        %v1196 = vadd.f32 %v510, %v1195
        %v1197 = vpop.f32.mrf.mxu0
        %v1198 = vadd.f32 %v514, %v1197
        %1199 = vdwg.mxu0
        %1200 = vmatprep.subr.bf16.mxu0 %v948
        %1201 = vmatpush1.bf16.msra.mxu0 %v947
        %1202 = vmatprep.subr.bf16.mxu0 %v946
        %1203 = vmatpush1.bf16.msra.mxu0 %v945
        %1204 = vmatprep.subr.bf16.mxu0 %v944
        %1205 = vmatpush1.bf16.msra.mxu0 %v943
        %1206 = vmatprep.subr.bf16.mxu0 %v942
        %1207 = vmatpush1.bf16.msra.mxu0 %v941
        %1208 = vmatprep.subr.bf16.mxu0 %v940
        %1209 = vmatpush1.bf16.msra.mxu0 %v939
        %1210 = vmatprep.subr.bf16.mxu0 %v938
        %1211 = vmatpush1.bf16.msra.mxu0 %v937
        %1212 = vmatprep.subr.bf16.mxu0 %v936
        %1213 = vmatpush1.bf16.msra.mxu0 %v935
        %1214 = vmatprep.subr.bf16.mxu0 %v934
        %1215 = vmatpush1.bf16.msra.mxu0 %v933
        %1216 = vmatprep.subr.bf16.mxu0 %v964
        %1217 = vmatpush2.bf16.msra.mxu0 %v963
        %1218 = vmatprep.subr.bf16.mxu0 %v962
        %1219 = vmatpush2.bf16.msra.mxu0 %v961
        %1220 = vmatprep.subr.bf16.mxu0 %v960
        %1221 = vmatpush2.bf16.msra.mxu0 %v959
        %1222 = vmatprep.subr.bf16.mxu0 %v958
        %1223 = vmatpush2.bf16.msra.mxu0 %v957
        %1224 = vmatprep.subr.bf16.mxu0 %v956
        %1225 = vmatpush2.bf16.msra.mxu0 %v955
        %1226 = vmatprep.subr.bf16.mxu0 %v954
        %1227 = vmatpush2.bf16.msra.mxu0 %v953
        %1228 = vmatprep.subr.bf16.mxu0 %v952
        %1229 = vmatpush2.bf16.msra.mxu0 %v951
        %1230 = vmatprep.subr.bf16.mxu0 %v950
        %1231 = vmatpush2.bf16.msra.mxu0 %v949
        %1232 = vmatprep.mubr.bf16.mxu0 %v372
        %1233 = vmatmul.mubr.bf16.gmra.mxu0 %v371
        %v1234 = vpop.f32.mrf.mxu0
        %v1235 = vadd.f32 %v1192, %v1234
        %v1236 = vpop.f32.mrf.mxu0
        %v1237 = vadd.f32 %v1194, %v1236
        %v1238 = vpop.f32.mrf.mxu0
        %v1239 = vadd.f32 %v1196, %v1238
        %v1240 = vpop.f32.mrf.mxu0
        %v1241 = vadd.f32 %v1198, %v1240
        %1242 = vdwg.mxu0
        %1243 = vmatprep.subr.bf16.mxu0 %v980
        %1244 = vmatpush1.bf16.msra.mxu0 %v979
        %1245 = vmatprep.subr.bf16.mxu0 %v978
        %1246 = vmatpush1.bf16.msra.mxu0 %v977
        %1247 = vmatprep.subr.bf16.mxu0 %v976
        %1248 = vmatpush1.bf16.msra.mxu0 %v975
        %1249 = vmatprep.subr.bf16.mxu0 %v974
        %1250 = vmatpush1.bf16.msra.mxu0 %v973
        %1251 = vmatprep.subr.bf16.mxu0 %v972
        %1252 = vmatpush1.bf16.msra.mxu0 %v971
        %1253 = vmatprep.subr.bf16.mxu0 %v970
        %1254 = vmatpush1.bf16.msra.mxu0 %v969
        %1255 = vmatprep.subr.bf16.mxu0 %v968
        %1256 = vmatpush1.bf16.msra.mxu0 %v967
        %1257 = vmatprep.subr.bf16.mxu0 %v966
        %1258 = vmatpush1.bf16.msra.mxu0 %v965
        %1259 = vmatprep.subr.bf16.mxu0 %v996
        %1260 = vmatpush2.bf16.msra.mxu0 %v995
        %1261 = vmatprep.subr.bf16.mxu0 %v994
        %1262 = vmatpush2.bf16.msra.mxu0 %v993
        %1263 = vmatprep.subr.bf16.mxu0 %v992
        %1264 = vmatpush2.bf16.msra.mxu0 %v991
        %1265 = vmatprep.subr.bf16.mxu0 %v990
        %1266 = vmatpush2.bf16.msra.mxu0 %v989
        %1267 = vmatprep.subr.bf16.mxu0 %v988
        %1268 = vmatpush2.bf16.msra.mxu0 %v987
        %1269 = vmatprep.subr.bf16.mxu0 %v986
        %1270 = vmatpush2.bf16.msra.mxu0 %v985
        %1271 = vmatprep.subr.bf16.mxu0 %v984
        %1272 = vmatpush2.bf16.msra.mxu0 %v983
        %1273 = vmatprep.subr.bf16.mxu0 %v982
        %1274 = vmatpush2.bf16.msra.mxu0 %v981
        %1275 = vmatprep.mubr.bf16.mxu0 %v374
        %1276 = vmatmul.mubr.bf16.gmra.mxu0 %v373
        %v1277 = vpop.f32.mrf.mxu0
        %v1278 = vadd.f32 %v1235, %v1277
        %v1279 = vpop.f32.mrf.mxu0
        %v1280 = vadd.f32 %v1237, %v1279
        %v1281 = vpop.f32.mrf.mxu0
        %v1282 = vadd.f32 %v1239, %v1281
        %v1283 = vpop.f32.mrf.mxu0
        %v1284 = vadd.f32 %v1241, %v1283
        %1285 = vdwg.mxu0
        %1286 = vmatprep.subr.bf16.mxu0 %v1012
        %1287 = vmatpush1.bf16.msra.mxu0 %v1011
        %1288 = vmatprep.subr.bf16.mxu0 %v1010
        %1289 = vmatpush1.bf16.msra.mxu0 %v1009
        %1290 = vmatprep.subr.bf16.mxu0 %v1008
        %1291 = vmatpush1.bf16.msra.mxu0 %v1007
        %1292 = vmatprep.subr.bf16.mxu0 %v1006
        %1293 = vmatpush1.bf16.msra.mxu0 %v1005
        %1294 = vmatprep.subr.bf16.mxu0 %v1004
        %1295 = vmatpush1.bf16.msra.mxu0 %v1003
        %1296 = vmatprep.subr.bf16.mxu0 %v1002
        %1297 = vmatpush1.bf16.msra.mxu0 %v1001
        %1298 = vmatprep.subr.bf16.mxu0 %v1000
        %1299 = vmatpush1.bf16.msra.mxu0 %v999
        %1300 = vmatprep.subr.bf16.mxu0 %v998
        %1301 = vmatpush1.bf16.msra.mxu0 %v997
        %1302 = vmatprep.subr.bf16.mxu0 %v1028
        %1303 = vmatpush2.bf16.msra.mxu0 %v1027
        %1304 = vmatprep.subr.bf16.mxu0 %v1026
        %1305 = vmatpush2.bf16.msra.mxu0 %v1025
        %1306 = vmatprep.subr.bf16.mxu0 %v1024
        %1307 = vmatpush2.bf16.msra.mxu0 %v1023
        %1308 = vmatprep.subr.bf16.mxu0 %v1022
        %1309 = vmatpush2.bf16.msra.mxu0 %v1021
        %1310 = vmatprep.subr.bf16.mxu0 %v1020
        %1311 = vmatpush2.bf16.msra.mxu0 %v1019
        %1312 = vmatprep.subr.bf16.mxu0 %v1018
        %1313 = vmatpush2.bf16.msra.mxu0 %v1017
        %1314 = vmatprep.subr.bf16.mxu0 %v1016
        %1315 = vmatpush2.bf16.msra.mxu0 %v1015
        %1316 = vmatprep.subr.bf16.mxu0 %v1014
        %1317 = vmatpush2.bf16.msra.mxu0 %v1013
        %1318 = vmatprep.mubr.bf16.mxu0 %v376
        %1319 = vmatmul.mubr.bf16.gmra.mxu0 %v375
        %v1320 = vpop.f32.mrf.mxu0
        %v1321 = vadd.f32 %v1278, %v1320
        %v1322 = vpop.f32.mrf.mxu0
        %v1323 = vadd.f32 %v1280, %v1322
        %v1324 = vpop.f32.mrf.mxu0
        %v1325 = vadd.f32 %v1282, %v1324
        %v1326 = vpop.f32.mrf.mxu0
        %v1327 = vadd.f32 %v1284, %v1326
        %1328 = vdwg.mxu0
        %v1329 = vmax.f32 %v1321, 0.0
        %v1330 = vmax.f32 %v1323, 0.0
        %v1331 = vmax.f32 %v1325, 0.0
        %v1332 = vmax.f32 %v1327, 0.0
        %vm1337 = vcmask 1040384
        %v1338 = vrot.slane %v1329, 7
        %v1339 = vrot.slane %v1330, 7
        %v1340 = vrot.slane %v1331, 7
        %v1341 = vsel %vm1337, %v1338, %v1340
        %v1342 = vrot.slane %v1332, 7
        %v1343 = vsel %vm1337, %v1339, %v1342
        %1350 = vst [vmem:[#allocation2] sm:$0xfe] %v1338
        %1351 = vst [vmem:[#allocation2 + $0x8] sm:$0xfe] %v1339
        %1352 = vst [vmem:[#allocation2 + $0x10] sm:$0xff] %v1341
        %1353 = vst [vmem:[#allocation2 + $0x18] sm:$0xff] %v1343
        %1354 = vst [vmem:[#allocation2 + $0x20] sm:$0x1] %v1340
        %1355 = vst [vmem:[#allocation2 + $0x28] sm:$0x1] %v1342
        %v1356 = vlaneseq
        %vm1357 = vcmp.ge.s32.totalorder %v1356, 0
        %vm1358 = vcmp.lt.s32.totalorder %v1356, 256
        %vm1359 = vmand %vm1357, %vm1358
        %1360 = vst.msk [vmem:[#allocation2] ss:$8 sm:$0x3] %vm1359, 0.0
        %1361 = vst.msk [vmem:[#allocation2] ss:$8 sm:$0x0] %vm1359, 0.0
        %s1362 = scalar_lea.vmem [#allocation2], 33
        %1363 = vst.msk [vmem:[%s1362] ss:$8 sm:$0x3] %vm1359, 0.0
        %1364 = vst.msk [vmem:[%s1362] ss:$8 sm:$0x0] %vm1359, 0.0
        %v1365 = vld [vmem:[#allocation2] sm:$0xff]
        %v1366 = vld [vmem:[#allocation2 + $0x8] sm:$0xff]
        %v1367 = vld [vmem:[#allocation2 + $0x10] sm:$0xff]
        %v1368 = vld [vmem:[#allocation2 + $0x18] sm:$0xff]
        %v1369 = vpack.c.bf16 %v1367, %v1365
        %v1370 = vpack.c.bf16 %v1368, %v1366
        %v1371 = vld [vmem:[#allocation8] sm:$0xff]
        %v1372 = vld [vmem:[#allocation8 + $0x8] sm:$0xff]
        %v1373 = vld [vmem:[#allocation8 + $0x10] sm:$0xff]
        %v1374 = vld [vmem:[#allocation8 + $0x18] sm:$0xff]
        %v1375 = vld [vmem:[#allocation8 + $0x20] sm:$0xff]
        %v1376 = vld [vmem:[#allocation8 + $0x28] sm:$0xff]
        %v1377 = vld [vmem:[#allocation8 + $0x30] sm:$0xff]
        %v1378 = vld [vmem:[#allocation8 + $0x38] sm:$0xff]
        %v1379 = vld [vmem:[#allocation8 + $0x40] sm:$0xff]
        %v1380 = vld [vmem:[#allocation8 + $0x48] sm:$0xff]
        %v1381 = vld [vmem:[#allocation8 + $0x50] sm:$0xff]
        %v1382 = vld [vmem:[#allocation8 + $0x58] sm:$0xff]
        %v1383 = vld [vmem:[#allocation8 + $0x60] sm:$0xff]
        %v1384 = vld [vmem:[#allocation8 + $0x68] sm:$0xff]
        %v1385 = vld [vmem:[#allocation8 + $0x70] sm:$0xff]
        %v1386 = vld [vmem:[#allocation8 + $0x78] sm:$0xff]
        %v1387 = vld [vmem:[#allocation8 + $0x80] sm:$0xff]
        %v1388 = vld [vmem:[#allocation8 + $0x88] sm:$0xff]
        %v1389 = vld [vmem:[#allocation8 + $0x90] sm:$0xff]
        %v1390 = vld [vmem:[#allocation8 + $0x98] sm:$0xff]
        %v1391 = vld [vmem:[#allocation8 + $0xa0] sm:$0xff]
        %v1392 = vld [vmem:[#allocation8 + $0xa8] sm:$0xff]
        %v1393 = vld [vmem:[#allocation8 + $0xb0] sm:$0xff]
        %v1394 = vld [vmem:[#allocation8 + $0xb8] sm:$0xff]
        %v1395 = vld [vmem:[#allocation8 + $0xc0] sm:$0xff]
        %v1396 = vld [vmem:[#allocation8 + $0xc8] sm:$0xff]
        %v1397 = vld [vmem:[#allocation8 + $0xd0] sm:$0xff]
        %v1398 = vld [vmem:[#allocation8 + $0xd8] sm:$0xff]
        %v1399 = vld [vmem:[#allocation8 + $0xe0] sm:$0xff]
        %v1400 = vld [vmem:[#allocation8 + $0xe8] sm:$0xff]
        %v1401 = vld [vmem:[#allocation8 + $0xf0] sm:$0xff]
        %v1402 = vld [vmem:[#allocation8 + $0xf8] sm:$0xff]
        %v1403 = vld [vmem:[#allocation2] sm:$0xfe]
        %v1404 = vld [vmem:[#allocation2 + $0x8] sm:$0xfe]
        %v1405 = vld [vmem:[#allocation2 + $0x20] sm:$0x1]
        %v1406 = vld [vmem:[#allocation2 + $0x28] sm:$0x1]
        %v1407 = vpack.c.bf16 %v1367, %v1403
        %v1408 = vpack.c.bf16 %v1368, %v1404
        %v1409 = vpack.c.bf16 %v1405, %v1405
        %v1410 = vpack.c.bf16 %v1406, %v1406
        %s1411 = scalar_lea.vmem [#allocation8], 256
        %v1412 = vld [vmem:[%s1411] sm:$0xff]
        %v1413 = vld [vmem:[%s1411 + $0x8] sm:$0xff]
        %v1414 = vld [vmem:[%s1411 + $0x10] sm:$0xff]
        %v1415 = vld [vmem:[%s1411 + $0x18] sm:$0xff]
        %v1416 = vld [vmem:[%s1411 + $0x20] sm:$0xff]
        %v1417 = vld [vmem:[%s1411 + $0x28] sm:$0xff]
        %v1418 = vld [vmem:[%s1411 + $0x30] sm:$0xff]
        %v1419 = vld [vmem:[%s1411 + $0x38] sm:$0xff]
        %v1420 = vld [vmem:[%s1411 + $0x40] sm:$0xff]
        %v1421 = vld [vmem:[%s1411 + $0x48] sm:$0xff]
        %v1422 = vld [vmem:[%s1411 + $0x50] sm:$0xff]
        %v1423 = vld [vmem:[%s1411 + $0x58] sm:$0xff]
        %v1424 = vld [vmem:[%s1411 + $0x60] sm:$0xff]
        %v1425 = vld [vmem:[%s1411 + $0x68] sm:$0xff]
        %v1426 = vld [vmem:[%s1411 + $0x70] sm:$0xff]
        %v1427 = vld [vmem:[%s1411 + $0x78] sm:$0xff]
        %v1428 = vld [vmem:[%s1411 + $0x80] sm:$0xff]
        %v1429 = vld [vmem:[%s1411 + $0x88] sm:$0xff]
        %v1430 = vld [vmem:[%s1411 + $0x90] sm:$0xff]
        %v1431 = vld [vmem:[%s1411 + $0x98] sm:$0xff]
        %v1432 = vld [vmem:[%s1411 + $0xa0] sm:$0xff]
        %v1433 = vld [vmem:[%s1411 + $0xa8] sm:$0xff]
        %v1434 = vld [vmem:[%s1411 + $0xb0] sm:$0xff]
        %v1435 = vld [vmem:[%s1411 + $0xb8] sm:$0xff]
        %v1436 = vld [vmem:[%s1411 + $0xc0] sm:$0xff]
        %v1437 = vld [vmem:[%s1411 + $0xc8] sm:$0xff]
        %v1438 = vld [vmem:[%s1411 + $0xd0] sm:$0xff]
        %v1439 = vld [vmem:[%s1411 + $0xd8] sm:$0xff]
        %v1440 = vld [vmem:[%s1411 + $0xe0] sm:$0xff]
        %v1441 = vld [vmem:[%s1411 + $0xe8] sm:$0xff]
        %v1442 = vld [vmem:[%s1411 + $0xf0] sm:$0xff]
        %v1443 = vld [vmem:[%s1411 + $0xf8] sm:$0xff]
        %vm1444 = vsmask.f32 7424
        %v1446 = vshrl.u32 %v1407, 16
        %v1448 = vshll.u32 %v1407, 16
        %v1450 = vrot.slane %v1448, 1
        %v1451 = vor.u32 %v1446, %v1450
        %v1453 = vshll.u32 %v1409, 16
        %v1455 = vrot.slane %v1453, 1
        %v1456 = vsel %vm1444, %v1451, %v1455
        %v1458 = vshrl.u32 %v1408, 16
        %v1460 = vshll.u32 %v1408, 16
        %v1462 = vrot.slane %v1460, 1
        %v1463 = vor.u32 %v1458, %v1462
        %v1465 = vshll.u32 %v1410, 16
        %v1467 = vrot.slane %v1465, 1
        %v1468 = vsel %vm1444, %v1463, %v1467
        %v1503 = vunpack.c.l.b16 %v1412
        %v1504 = vunpack.c.h.b16 %v1412
        %v1505 = vunpack.c.l.b16 %v1413
        %v1506 = vunpack.c.h.b16 %v1413
        %v1507 = vunpack.c.l.b16 %v1414
        %v1508 = vunpack.c.h.b16 %v1414
        %v1509 = vunpack.c.l.b16 %v1415
        %v1510 = vunpack.c.h.b16 %v1415
        %v1511 = vunpack.c.l.b16 %v1416
        %v1512 = vunpack.c.h.b16 %v1416
        %v1513 = vunpack.c.l.b16 %v1417
        %v1514 = vunpack.c.h.b16 %v1417
        %v1515 = vunpack.c.l.b16 %v1418
        %v1516 = vunpack.c.h.b16 %v1418
        %v1517 = vunpack.c.l.b16 %v1419
        %v1518 = vunpack.c.h.b16 %v1419
        %v1519 = vunpack.c.l.b16 %v1420
        %v1520 = vunpack.c.h.b16 %v1420
        %v1521 = vunpack.c.l.b16 %v1421
        %v1522 = vunpack.c.h.b16 %v1421
        %v1523 = vunpack.c.l.b16 %v1422
        %v1524 = vunpack.c.h.b16 %v1422
        %v1525 = vunpack.c.l.b16 %v1423
        %v1526 = vunpack.c.h.b16 %v1423
        %v1527 = vunpack.c.l.b16 %v1424
        %v1528 = vunpack.c.h.b16 %v1424
        %v1529 = vunpack.c.l.b16 %v1425
        %v1530 = vunpack.c.h.b16 %v1425
        %v1531 = vunpack.c.l.b16 %v1426
        %v1532 = vunpack.c.h.b16 %v1426
        %v1533 = vunpack.c.l.b16 %v1427
        %v1534 = vunpack.c.h.b16 %v1427
        %v1535 = vunpack.c.l.b16 %v1428
        %v1536 = vunpack.c.h.b16 %v1428
        %v1537 = vunpack.c.l.b16 %v1429
        %v1538 = vunpack.c.h.b16 %v1429
        %v1539 = vunpack.c.l.b16 %v1430
        %v1540 = vunpack.c.h.b16 %v1430
        %v1541 = vunpack.c.l.b16 %v1431
        %v1542 = vunpack.c.h.b16 %v1431
        %v1543 = vunpack.c.l.b16 %v1432
        %v1544 = vunpack.c.h.b16 %v1432
        %v1545 = vunpack.c.l.b16 %v1433
        %v1546 = vunpack.c.h.b16 %v1433
        %v1547 = vunpack.c.l.b16 %v1434
        %v1548 = vunpack.c.h.b16 %v1434
        %v1549 = vunpack.c.l.b16 %v1435
        %v1550 = vunpack.c.h.b16 %v1435
        %v1551 = vunpack.c.l.b16 %v1436
        %v1552 = vunpack.c.h.b16 %v1436
        %v1553 = vunpack.c.l.b16 %v1437
        %v1554 = vunpack.c.h.b16 %v1437
        %v1555 = vunpack.c.l.b16 %v1438
        %v1556 = vunpack.c.h.b16 %v1438
        %v1557 = vunpack.c.l.b16 %v1439
        %v1558 = vunpack.c.h.b16 %v1439
        %v1559 = vunpack.c.l.b16 %v1440
        %v1560 = vunpack.c.h.b16 %v1440
        %v1561 = vunpack.c.l.b16 %v1441
        %v1562 = vunpack.c.h.b16 %v1441
        %v1563 = vunpack.c.l.b16 %v1442
        %v1564 = vunpack.c.h.b16 %v1442
        %v1565 = vunpack.c.l.b16 %v1443
        %v1566 = vunpack.c.h.b16 %v1443
        %v1567 = vpack.c.b16 %v1505, %v1503
        %v1568 = vpack.c.b16 %v1506, %v1504
        %v1569 = vpack.c.b16 %v1509, %v1507
        %v1570 = vpack.c.b16 %v1510, %v1508
        %v1571 = vpack.c.b16 %v1513, %v1511
        %v1572 = vpack.c.b16 %v1514, %v1512
        %v1573 = vpack.c.b16 %v1517, %v1515
        %v1574 = vpack.c.b16 %v1518, %v1516
        %v1575 = vpack.c.b16 %v1521, %v1519
        %v1576 = vpack.c.b16 %v1522, %v1520
        %v1577 = vpack.c.b16 %v1525, %v1523
        %v1578 = vpack.c.b16 %v1526, %v1524
        %v1579 = vpack.c.b16 %v1529, %v1527
        %v1580 = vpack.c.b16 %v1530, %v1528
        %v1581 = vpack.c.b16 %v1533, %v1531
        %v1582 = vpack.c.b16 %v1534, %v1532
        %v1583 = vpack.c.b16 %v1537, %v1535
        %v1584 = vpack.c.b16 %v1538, %v1536
        %v1585 = vpack.c.b16 %v1541, %v1539
        %v1586 = vpack.c.b16 %v1542, %v1540
        %v1587 = vpack.c.b16 %v1545, %v1543
        %v1588 = vpack.c.b16 %v1546, %v1544
        %v1589 = vpack.c.b16 %v1549, %v1547
        %v1590 = vpack.c.b16 %v1550, %v1548
        %v1591 = vpack.c.b16 %v1553, %v1551
        %v1592 = vpack.c.b16 %v1554, %v1552
        %v1593 = vpack.c.b16 %v1557, %v1555
        %v1594 = vpack.c.b16 %v1558, %v1556
        %v1595 = vpack.c.b16 %v1561, %v1559
        %v1596 = vpack.c.b16 %v1562, %v1560
        %v1597 = vpack.c.b16 %v1565, %v1563
        %v1598 = vpack.c.b16 %v1566, %v1564
        %1631 = vmatprep.subr.bf16.mxu0 %v1582
        %1632 = vmatpush1.bf16.msra.mxu0 %v1581
        %1633 = vmatprep.subr.bf16.mxu0 %v1580
        %1634 = vmatpush1.bf16.msra.mxu0 %v1579
        %1635 = vmatprep.subr.bf16.mxu0 %v1578
        %1636 = vmatpush1.bf16.msra.mxu0 %v1577
        %1637 = vmatprep.subr.bf16.mxu0 %v1576
        %1638 = vmatpush1.bf16.msra.mxu0 %v1575
        %1639 = vmatprep.subr.bf16.mxu0 %v1574
        %1640 = vmatpush1.bf16.msra.mxu0 %v1573
        %1641 = vmatprep.subr.bf16.mxu0 %v1572
        %1642 = vmatpush1.bf16.msra.mxu0 %v1571
        %1643 = vmatprep.subr.bf16.mxu0 %v1570
        %1644 = vmatpush1.bf16.msra.mxu0 %v1569
        %1645 = vmatprep.subr.bf16.mxu0 %v1568
        %1646 = vmatpush1.bf16.msra.mxu0 %v1567
        %1647 = vmatprep.subr.bf16.mxu0 %v1598
        %1648 = vmatpush2.bf16.msra.mxu0 %v1597
        %1649 = vmatprep.subr.bf16.mxu0 %v1596
        %1650 = vmatpush2.bf16.msra.mxu0 %v1595
        %1651 = vmatprep.subr.bf16.mxu0 %v1594
        %1652 = vmatpush2.bf16.msra.mxu0 %v1593
        %1653 = vmatprep.subr.bf16.mxu0 %v1592
        %1654 = vmatpush2.bf16.msra.mxu0 %v1591
        %1655 = vmatprep.subr.bf16.mxu0 %v1590
        %1656 = vmatpush2.bf16.msra.mxu0 %v1589
        %1657 = vmatprep.subr.bf16.mxu0 %v1588
        %1658 = vmatpush2.bf16.msra.mxu0 %v1587
        %1659 = vmatprep.subr.bf16.mxu0 %v1586
        %1660 = vmatpush2.bf16.msra.mxu0 %v1585
        %1661 = vmatprep.subr.bf16.mxu0 %v1584
        %1662 = vmatpush2.bf16.msra.mxu0 %v1583
        %1663 = vmatprep.mubr.bf16.mxu0 %v1468
        %1664 = vmatmul.mubr.bf16.gmra.mxu0 %v1456
        %v1665 = vpop.f32.mrf.mxu0
        %v1666 = vadd.f32 0.0, %v1665
        %v1667 = vpop.f32.mrf.mxu0
        %v1668 = vadd.f32 0.0, %v1667
        %v1669 = vpop.f32.mrf.mxu0
        %v1670 = vadd.f32 0.0, %v1669
        %v1671 = vpop.f32.mrf.mxu0
        %v1672 = vadd.f32 0.0, %v1671
        %1673 = vdwg.mxu0
        %v1706 = vunpack.c.l.b16 %v1371
        %v1707 = vunpack.c.h.b16 %v1371
        %v1708 = vunpack.c.l.b16 %v1372
        %v1709 = vunpack.c.h.b16 %v1372
        %v1710 = vunpack.c.l.b16 %v1373
        %v1711 = vunpack.c.h.b16 %v1373
        %v1712 = vunpack.c.l.b16 %v1374
        %v1713 = vunpack.c.h.b16 %v1374
        %v1714 = vunpack.c.l.b16 %v1375
        %v1715 = vunpack.c.h.b16 %v1375
        %v1716 = vunpack.c.l.b16 %v1376
        %v1717 = vunpack.c.h.b16 %v1376
        %v1718 = vunpack.c.l.b16 %v1377
        %v1719 = vunpack.c.h.b16 %v1377
        %v1720 = vunpack.c.l.b16 %v1378
        %v1721 = vunpack.c.h.b16 %v1378
        %v1722 = vunpack.c.l.b16 %v1379
        %v1723 = vunpack.c.h.b16 %v1379
        %v1724 = vunpack.c.l.b16 %v1380
        %v1725 = vunpack.c.h.b16 %v1380
        %v1726 = vunpack.c.l.b16 %v1381
        %v1727 = vunpack.c.h.b16 %v1381
        %v1728 = vunpack.c.l.b16 %v1382
        %v1729 = vunpack.c.h.b16 %v1382
        %v1730 = vunpack.c.l.b16 %v1383
        %v1731 = vunpack.c.h.b16 %v1383
        %v1732 = vunpack.c.l.b16 %v1384
        %v1733 = vunpack.c.h.b16 %v1384
        %v1734 = vunpack.c.l.b16 %v1385
        %v1735 = vunpack.c.h.b16 %v1385
        %v1736 = vunpack.c.l.b16 %v1386
        %v1737 = vunpack.c.h.b16 %v1386
        %v1738 = vunpack.c.l.b16 %v1387
        %v1739 = vunpack.c.h.b16 %v1387
        %v1740 = vunpack.c.l.b16 %v1388
        %v1741 = vunpack.c.h.b16 %v1388
        %v1742 = vunpack.c.l.b16 %v1389
        %v1743 = vunpack.c.h.b16 %v1389
        %v1744 = vunpack.c.l.b16 %v1390
        %v1745 = vunpack.c.h.b16 %v1390
        %v1746 = vunpack.c.l.b16 %v1391
        %v1747 = vunpack.c.h.b16 %v1391
        %v1748 = vunpack.c.l.b16 %v1392
        %v1749 = vunpack.c.h.b16 %v1392
        %v1750 = vunpack.c.l.b16 %v1393
        %v1751 = vunpack.c.h.b16 %v1393
        %v1752 = vunpack.c.l.b16 %v1394
        %v1753 = vunpack.c.h.b16 %v1394
        %v1754 = vunpack.c.l.b16 %v1395
        %v1755 = vunpack.c.h.b16 %v1395
        %v1756 = vunpack.c.l.b16 %v1396
        %v1757 = vunpack.c.h.b16 %v1396
        %v1758 = vunpack.c.l.b16 %v1397
        %v1759 = vunpack.c.h.b16 %v1397
        %v1760 = vunpack.c.l.b16 %v1398
        %v1761 = vunpack.c.h.b16 %v1398
        %v1762 = vunpack.c.l.b16 %v1399
        %v1763 = vunpack.c.h.b16 %v1399
        %v1764 = vunpack.c.l.b16 %v1400
        %v1765 = vunpack.c.h.b16 %v1400
        %v1766 = vunpack.c.l.b16 %v1401
        %v1767 = vunpack.c.h.b16 %v1401
        %v1768 = vunpack.c.l.b16 %v1402
        %v1769 = vunpack.c.h.b16 %v1402
        %v1770 = vpack.c.b16 %v1708, %v1706
        %v1771 = vpack.c.b16 %v1709, %v1707
        %v1772 = vpack.c.b16 %v1712, %v1710
        %v1773 = vpack.c.b16 %v1713, %v1711
        %v1774 = vpack.c.b16 %v1716, %v1714
        %v1775 = vpack.c.b16 %v1717, %v1715
        %v1776 = vpack.c.b16 %v1720, %v1718
        %v1777 = vpack.c.b16 %v1721, %v1719
        %v1778 = vpack.c.b16 %v1724, %v1722
        %v1779 = vpack.c.b16 %v1725, %v1723
        %v1780 = vpack.c.b16 %v1728, %v1726
        %v1781 = vpack.c.b16 %v1729, %v1727
        %v1782 = vpack.c.b16 %v1732, %v1730
        %v1783 = vpack.c.b16 %v1733, %v1731
        %v1784 = vpack.c.b16 %v1736, %v1734
        %v1785 = vpack.c.b16 %v1737, %v1735
        %v1786 = vpack.c.b16 %v1740, %v1738
        %v1787 = vpack.c.b16 %v1741, %v1739
        %v1788 = vpack.c.b16 %v1744, %v1742
        %v1789 = vpack.c.b16 %v1745, %v1743
        %v1790 = vpack.c.b16 %v1748, %v1746
        %v1791 = vpack.c.b16 %v1749, %v1747
        %v1792 = vpack.c.b16 %v1752, %v1750
        %v1793 = vpack.c.b16 %v1753, %v1751
        %v1794 = vpack.c.b16 %v1756, %v1754
        %v1795 = vpack.c.b16 %v1757, %v1755
        %v1796 = vpack.c.b16 %v1760, %v1758
        %v1797 = vpack.c.b16 %v1761, %v1759
        %v1798 = vpack.c.b16 %v1764, %v1762
        %v1799 = vpack.c.b16 %v1765, %v1763
        %v1800 = vpack.c.b16 %v1768, %v1766
        %v1801 = vpack.c.b16 %v1769, %v1767
        %1834 = vmatprep.subr.bf16.mxu0 %v1785
        %1835 = vmatpush1.bf16.msra.mxu0 %v1784
        %1836 = vmatprep.subr.bf16.mxu0 %v1783
        %1837 = vmatpush1.bf16.msra.mxu0 %v1782
        %1838 = vmatprep.subr.bf16.mxu0 %v1781
        %1839 = vmatpush1.bf16.msra.mxu0 %v1780
        %1840 = vmatprep.subr.bf16.mxu0 %v1779
        %1841 = vmatpush1.bf16.msra.mxu0 %v1778
        %1842 = vmatprep.subr.bf16.mxu0 %v1777
        %1843 = vmatpush1.bf16.msra.mxu0 %v1776
        %1844 = vmatprep.subr.bf16.mxu0 %v1775
        %1845 = vmatpush1.bf16.msra.mxu0 %v1774
        %1846 = vmatprep.subr.bf16.mxu0 %v1773
        %1847 = vmatpush1.bf16.msra.mxu0 %v1772
        %1848 = vmatprep.subr.bf16.mxu0 %v1771
        %1849 = vmatpush1.bf16.msra.mxu0 %v1770
        %1850 = vmatprep.subr.bf16.mxu0 %v1801
        %1851 = vmatpush2.bf16.msra.mxu0 %v1800
        %1852 = vmatprep.subr.bf16.mxu0 %v1799
        %1853 = vmatpush2.bf16.msra.mxu0 %v1798
        %1854 = vmatprep.subr.bf16.mxu0 %v1797
        %1855 = vmatpush2.bf16.msra.mxu0 %v1796
        %1856 = vmatprep.subr.bf16.mxu0 %v1795
        %1857 = vmatpush2.bf16.msra.mxu0 %v1794
        %1858 = vmatprep.subr.bf16.mxu0 %v1793
        %1859 = vmatpush2.bf16.msra.mxu0 %v1792
        %1860 = vmatprep.subr.bf16.mxu0 %v1791
        %1861 = vmatpush2.bf16.msra.mxu0 %v1790
        %1862 = vmatprep.subr.bf16.mxu0 %v1789
        %1863 = vmatpush2.bf16.msra.mxu0 %v1788
        %1864 = vmatprep.subr.bf16.mxu0 %v1787
        %1865 = vmatpush2.bf16.msra.mxu0 %v1786
        %1866 = vmatprep.mubr.bf16.mxu0 %v1370
        %1867 = vmatmul.mubr.bf16.gmra.mxu0 %v1369
        %v1868 = vpop.f32.mrf.mxu0
        %v1869 = vadd.f32 %v1666, %v1868
        %v1870 = vpop.f32.mrf.mxu0
        %v1871 = vadd.f32 %v1668, %v1870
        %v1872 = vpop.f32.mrf.mxu0
        %v1873 = vadd.f32 %v1670, %v1872
        %v1874 = vpop.f32.mrf.mxu0
        %v1875 = vadd.f32 %v1672, %v1874
        %1876 = vdwg.mxu0
        %v1877 = vld [vmem:[#allocation2] sm:$0xfc]
        %v1878 = vld [vmem:[#allocation2 + $0x8] sm:$0xfc]
        %v1879 = vld [vmem:[#allocation2 + $0x20] sm:$0x3]
        %v1880 = vld [vmem:[#allocation2 + $0x28] sm:$0x3]
        %v1881 = vpack.c.bf16 %v1367, %v1877
        %v1882 = vpack.c.bf16 %v1368, %v1878
        %v1883 = vpack.c.bf16 %v1879, %v1879
        %v1884 = vpack.c.bf16 %v1880, %v1880
        %s1885 = scalar_lea.vmem [#allocation8], 512
        %v1886 = vld [vmem:[%s1885] sm:$0xff]
        %v1887 = vld [vmem:[%s1885 + $0x8] sm:$0xff]
        %v1888 = vld [vmem:[%s1885 + $0x10] sm:$0xff]
        %v1889 = vld [vmem:[%s1885 + $0x18] sm:$0xff]
        %v1890 = vld [vmem:[%s1885 + $0x20] sm:$0xff]
        %v1891 = vld [vmem:[%s1885 + $0x28] sm:$0xff]
        %v1892 = vld [vmem:[%s1885 + $0x30] sm:$0xff]
        %v1893 = vld [vmem:[%s1885 + $0x38] sm:$0xff]
        %v1894 = vld [vmem:[%s1885 + $0x40] sm:$0xff]
        %v1895 = vld [vmem:[%s1885 + $0x48] sm:$0xff]
        %v1896 = vld [vmem:[%s1885 + $0x50] sm:$0xff]
        %v1897 = vld [vmem:[%s1885 + $0x58] sm:$0xff]
        %v1898 = vld [vmem:[%s1885 + $0x60] sm:$0xff]
        %v1899 = vld [vmem:[%s1885 + $0x68] sm:$0xff]
        %v1900 = vld [vmem:[%s1885 + $0x70] sm:$0xff]
        %v1901 = vld [vmem:[%s1885 + $0x78] sm:$0xff]
        %v1902 = vld [vmem:[%s1885 + $0x80] sm:$0xff]
        %v1903 = vld [vmem:[%s1885 + $0x88] sm:$0xff]
        %v1904 = vld [vmem:[%s1885 + $0x90] sm:$0xff]
        %v1905 = vld [vmem:[%s1885 + $0x98] sm:$0xff]
        %v1906 = vld [vmem:[%s1885 + $0xa0] sm:$0xff]
        %v1907 = vld [vmem:[%s1885 + $0xa8] sm:$0xff]
        %v1908 = vld [vmem:[%s1885 + $0xb0] sm:$0xff]
        %v1909 = vld [vmem:[%s1885 + $0xb8] sm:$0xff]
        %v1910 = vld [vmem:[%s1885 + $0xc0] sm:$0xff]
        %v1911 = vld [vmem:[%s1885 + $0xc8] sm:$0xff]
        %v1912 = vld [vmem:[%s1885 + $0xd0] sm:$0xff]
        %v1913 = vld [vmem:[%s1885 + $0xd8] sm:$0xff]
        %v1914 = vld [vmem:[%s1885 + $0xe0] sm:$0xff]
        %v1915 = vld [vmem:[%s1885 + $0xe8] sm:$0xff]
        %v1916 = vld [vmem:[%s1885 + $0xf0] sm:$0xff]
        %v1917 = vld [vmem:[%s1885 + $0xf8] sm:$0xff]
        %vm1922 = vcmask 1046528
        %v1923 = vrot.slane %v1881, 1
        %v1924 = vrot.slane %v1883, 1
        %v1925 = vsel %vm1922, %v1923, %v1924
        %v1926 = vrot.slane %v1882, 1
        %v1927 = vrot.slane %v1884, 1
        %v1928 = vsel %vm1922, %v1926, %v1927
        %v1963 = vunpack.c.l.b16 %v1886
        %v1964 = vunpack.c.h.b16 %v1886
        %v1965 = vunpack.c.l.b16 %v1887
        %v1966 = vunpack.c.h.b16 %v1887
        %v1967 = vunpack.c.l.b16 %v1888
        %v1968 = vunpack.c.h.b16 %v1888
        %v1969 = vunpack.c.l.b16 %v1889
        %v1970 = vunpack.c.h.b16 %v1889
        %v1971 = vunpack.c.l.b16 %v1890
        %v1972 = vunpack.c.h.b16 %v1890
        %v1973 = vunpack.c.l.b16 %v1891
        %v1974 = vunpack.c.h.b16 %v1891
        %v1975 = vunpack.c.l.b16 %v1892
        %v1976 = vunpack.c.h.b16 %v1892
        %v1977 = vunpack.c.l.b16 %v1893
        %v1978 = vunpack.c.h.b16 %v1893
        %v1979 = vunpack.c.l.b16 %v1894
        %v1980 = vunpack.c.h.b16 %v1894
        %v1981 = vunpack.c.l.b16 %v1895
        %v1982 = vunpack.c.h.b16 %v1895
        %v1983 = vunpack.c.l.b16 %v1896
        %v1984 = vunpack.c.h.b16 %v1896
        %v1985 = vunpack.c.l.b16 %v1897
        %v1986 = vunpack.c.h.b16 %v1897
        %v1987 = vunpack.c.l.b16 %v1898
        %v1988 = vunpack.c.h.b16 %v1898
        %v1989 = vunpack.c.l.b16 %v1899
        %v1990 = vunpack.c.h.b16 %v1899
        %v1991 = vunpack.c.l.b16 %v1900
        %v1992 = vunpack.c.h.b16 %v1900
        %v1993 = vunpack.c.l.b16 %v1901
        %v1994 = vunpack.c.h.b16 %v1901
        %v1995 = vunpack.c.l.b16 %v1902
        %v1996 = vunpack.c.h.b16 %v1902
        %v1997 = vunpack.c.l.b16 %v1903
        %v1998 = vunpack.c.h.b16 %v1903
        %v1999 = vunpack.c.l.b16 %v1904
        %v2000 = vunpack.c.h.b16 %v1904
        %v2001 = vunpack.c.l.b16 %v1905
        %v2002 = vunpack.c.h.b16 %v1905
        %v2003 = vunpack.c.l.b16 %v1906
        %v2004 = vunpack.c.h.b16 %v1906
        %v2005 = vunpack.c.l.b16 %v1907
        %v2006 = vunpack.c.h.b16 %v1907
        %v2007 = vunpack.c.l.b16 %v1908
        %v2008 = vunpack.c.h.b16 %v1908
        %v2009 = vunpack.c.l.b16 %v1909
        %v2010 = vunpack.c.h.b16 %v1909
        %v2011 = vunpack.c.l.b16 %v1910
        %v2012 = vunpack.c.h.b16 %v1910
        %v2013 = vunpack.c.l.b16 %v1911
        %v2014 = vunpack.c.h.b16 %v1911
        %v2015 = vunpack.c.l.b16 %v1912
        %v2016 = vunpack.c.h.b16 %v1912
        %v2017 = vunpack.c.l.b16 %v1913
        %v2018 = vunpack.c.h.b16 %v1913
        %v2019 = vunpack.c.l.b16 %v1914
        %v2020 = vunpack.c.h.b16 %v1914
        %v2021 = vunpack.c.l.b16 %v1915
        %v2022 = vunpack.c.h.b16 %v1915
        %v2023 = vunpack.c.l.b16 %v1916
        %v2024 = vunpack.c.h.b16 %v1916
        %v2025 = vunpack.c.l.b16 %v1917
        %v2026 = vunpack.c.h.b16 %v1917
        %v2027 = vpack.c.b16 %v1965, %v1963
        %v2028 = vpack.c.b16 %v1966, %v1964
        %v2029 = vpack.c.b16 %v1969, %v1967
        %v2030 = vpack.c.b16 %v1970, %v1968
        %v2031 = vpack.c.b16 %v1973, %v1971
        %v2032 = vpack.c.b16 %v1974, %v1972
        %v2033 = vpack.c.b16 %v1977, %v1975
        %v2034 = vpack.c.b16 %v1978, %v1976
        %v2035 = vpack.c.b16 %v1981, %v1979
        %v2036 = vpack.c.b16 %v1982, %v1980
        %v2037 = vpack.c.b16 %v1985, %v1983
        %v2038 = vpack.c.b16 %v1986, %v1984
        %v2039 = vpack.c.b16 %v1989, %v1987
        %v2040 = vpack.c.b16 %v1990, %v1988
        %v2041 = vpack.c.b16 %v1993, %v1991
        %v2042 = vpack.c.b16 %v1994, %v1992
        %v2043 = vpack.c.b16 %v1997, %v1995
        %v2044 = vpack.c.b16 %v1998, %v1996
        %v2045 = vpack.c.b16 %v2001, %v1999
        %v2046 = vpack.c.b16 %v2002, %v2000
        %v2047 = vpack.c.b16 %v2005, %v2003
        %v2048 = vpack.c.b16 %v2006, %v2004
        %v2049 = vpack.c.b16 %v2009, %v2007
        %v2050 = vpack.c.b16 %v2010, %v2008
        %v2051 = vpack.c.b16 %v2013, %v2011
        %v2052 = vpack.c.b16 %v2014, %v2012
        %v2053 = vpack.c.b16 %v2017, %v2015
        %v2054 = vpack.c.b16 %v2018, %v2016
        %v2055 = vpack.c.b16 %v2021, %v2019
        %v2056 = vpack.c.b16 %v2022, %v2020
        %v2057 = vpack.c.b16 %v2025, %v2023
        %v2058 = vpack.c.b16 %v2026, %v2024
        %2091 = vmatprep.subr.bf16.mxu0 %v2042
        %2092 = vmatpush1.bf16.msra.mxu0 %v2041
        %2093 = vmatprep.subr.bf16.mxu0 %v2040
        %2094 = vmatpush1.bf16.msra.mxu0 %v2039
        %2095 = vmatprep.subr.bf16.mxu0 %v2038
        %2096 = vmatpush1.bf16.msra.mxu0 %v2037
        %2097 = vmatprep.subr.bf16.mxu0 %v2036
        %2098 = vmatpush1.bf16.msra.mxu0 %v2035
        %2099 = vmatprep.subr.bf16.mxu0 %v2034
        %2100 = vmatpush1.bf16.msra.mxu0 %v2033
        %2101 = vmatprep.subr.bf16.mxu0 %v2032
        %2102 = vmatpush1.bf16.msra.mxu0 %v2031
        %2103 = vmatprep.subr.bf16.mxu0 %v2030
        %2104 = vmatpush1.bf16.msra.mxu0 %v2029
        %2105 = vmatprep.subr.bf16.mxu0 %v2028
        %2106 = vmatpush1.bf16.msra.mxu0 %v2027
        %2107 = vmatprep.subr.bf16.mxu0 %v2058
        %2108 = vmatpush2.bf16.msra.mxu0 %v2057
        %2109 = vmatprep.subr.bf16.mxu0 %v2056
        %2110 = vmatpush2.bf16.msra.mxu0 %v2055
        %2111 = vmatprep.subr.bf16.mxu0 %v2054
        %2112 = vmatpush2.bf16.msra.mxu0 %v2053
        %2113 = vmatprep.subr.bf16.mxu0 %v2052
        %2114 = vmatpush2.bf16.msra.mxu0 %v2051
        %2115 = vmatprep.subr.bf16.mxu0 %v2050
        %2116 = vmatpush2.bf16.msra.mxu0 %v2049
        %2117 = vmatprep.subr.bf16.mxu0 %v2048
        %2118 = vmatpush2.bf16.msra.mxu0 %v2047
        %2119 = vmatprep.subr.bf16.mxu0 %v2046
        %2120 = vmatpush2.bf16.msra.mxu0 %v2045
        %2121 = vmatprep.subr.bf16.mxu0 %v2044
        %2122 = vmatpush2.bf16.msra.mxu0 %v2043
        %2123 = vmatprep.mubr.bf16.mxu0 %v1928
        %2124 = vmatmul.mubr.bf16.gmra.mxu0 %v1925
        %v2125 = vpop.f32.mrf.mxu0
        %v2126 = vadd.f32 0.0, %v2125
        %v2127 = vpop.f32.mrf.mxu0
        %v2128 = vadd.f32 0.0, %v2127
        %v2129 = vpop.f32.mrf.mxu0
        %v2130 = vadd.f32 0.0, %v2129
        %v2131 = vpop.f32.mrf.mxu0
        %v2132 = vadd.f32 0.0, %v2131
        %2133 = vdwg.mxu0
        %v2134 = vadd.f32 %v1869, %v2126
        %v2135 = vadd.f32 %v1871, %v2128
        %v2136 = vadd.f32 %v1873, %v2130
        %v2137 = vadd.f32 %v1875, %v2132
        %v2138 = vld [vmem:[#allocation11] sm:$0x3]
        %v2140 = vlaneseq
        %v2141 = vshrl.u32 %v2140, 7
        %v2142 = vsub.s32 0, %v2141
        %v2143 = vrot.slane %v2138, %v2142
        %v2144 = vlaneseq
        %v2145 = vshrl.u32 %v2144, 7
        %v2146 = vsub.s32 1, %v2145
        %v2147 = vrot.slane %v2138, %v2146
        %v2150 = vadd.f32 %v2134, %v2143
        %v2151 = vadd.f32 %v2135, %v2147
        %v2152 = vadd.f32 %v2136, %v2143
        %v2153 = vadd.f32 %v2137, %v2147
        %v2154 = vmax.f32 %v2150, 0.0
        %v2155 = vmax.f32 %v2151, 0.0
        %v2156 = vmax.f32 %v2152, 0.0
        %v2157 = vmax.f32 %v2153, 0.0
        %v2158 = vpack.c.bf16 %v2156, %v2154
        %v2159 = vpack.c.bf16 %v2157, %v2155
        %v2160 = vld [vmem:[#allocation9] sm:$0xff]
        %v2161 = vld [vmem:[#allocation9 + $0x8] sm:$0xff]
        %v2162 = vld [vmem:[#allocation9 + $0x10] sm:$0xff]
        %v2163 = vld [vmem:[#allocation9 + $0x18] sm:$0xff]
        %v2164 = vld [vmem:[#allocation9 + $0x20] sm:$0xff]
        %v2165 = vld [vmem:[#allocation9 + $0x28] sm:$0xff]
        %v2166 = vld [vmem:[#allocation9 + $0x30] sm:$0xff]
        %v2167 = vld [vmem:[#allocation9 + $0x38] sm:$0xff]
        %v2168 = vld [vmem:[#allocation9 + $0x40] sm:$0xff]
        %v2169 = vld [vmem:[#allocation9 + $0x48] sm:$0xff]
        %v2170 = vld [vmem:[#allocation9 + $0x50] sm:$0xff]
        %v2171 = vld [vmem:[#allocation9 + $0x58] sm:$0xff]
        %v2172 = vld [vmem:[#allocation9 + $0x60] sm:$0xff]
        %v2173 = vld [vmem:[#allocation9 + $0x68] sm:$0xff]
        %v2174 = vld [vmem:[#allocation9 + $0x70] sm:$0xff]
        %v2175 = vld [vmem:[#allocation9 + $0x78] sm:$0xff]
        %v2176 = vld [vmem:[#allocation9 + $0x80] sm:$0xff]
        %v2177 = vld [vmem:[#allocation9 + $0x88] sm:$0xff]
        %v2178 = vld [vmem:[#allocation9 + $0x90] sm:$0xff]
        %v2179 = vld [vmem:[#allocation9 + $0x98] sm:$0xff]
        %v2180 = vld [vmem:[#allocation9 + $0xa0] sm:$0xff]
        %v2181 = vld [vmem:[#allocation9 + $0xa8] sm:$0xff]
        %v2182 = vld [vmem:[#allocation9 + $0xb0] sm:$0xff]
        %v2183 = vld [vmem:[#allocation9 + $0xb8] sm:$0xff]
        %v2184 = vld [vmem:[#allocation9 + $0xc0] sm:$0xff]
        %v2185 = vld [vmem:[#allocation9 + $0xc8] sm:$0xff]
        %v2186 = vld [vmem:[#allocation9 + $0xd0] sm:$0xff]
        %v2187 = vld [vmem:[#allocation9 + $0xd8] sm:$0xff]
        %v2188 = vld [vmem:[#allocation9 + $0xe0] sm:$0xff]
        %v2189 = vld [vmem:[#allocation9 + $0xe8] sm:$0xff]
        %v2190 = vld [vmem:[#allocation9 + $0xf0] sm:$0xff]
        %v2191 = vld [vmem:[#allocation9 + $0xf8] sm:$0xff]
        %v2192 = vld [vmem:[#allocation9 + $0x100] sm:$0xff]
        %v2193 = vld [vmem:[#allocation9 + $0x108] sm:$0xff]
        %v2194 = vld [vmem:[#allocation9 + $0x110] sm:$0xff]
        %v2195 = vld [vmem:[#allocation9 + $0x118] sm:$0xff]
        %v2196 = vld [vmem:[#allocation9 + $0x120] sm:$0xff]
        %v2197 = vld [vmem:[#allocation9 + $0x128] sm:$0xff]
        %v2198 = vld [vmem:[#allocation9 + $0x130] sm:$0xff]
        %v2199 = vld [vmem:[#allocation9 + $0x138] sm:$0xff]
        %v2200 = vld [vmem:[#allocation9 + $0x140] sm:$0xff]
        %v2201 = vld [vmem:[#allocation9 + $0x148] sm:$0xff]
        %v2202 = vld [vmem:[#allocation9 + $0x150] sm:$0xff]
        %v2203 = vld [vmem:[#allocation9 + $0x158] sm:$0xff]
        %v2204 = vld [vmem:[#allocation9 + $0x160] sm:$0xff]
        %v2205 = vld [vmem:[#allocation9 + $0x168] sm:$0xff]
        %v2206 = vld [vmem:[#allocation9 + $0x170] sm:$0xff]
        %v2207 = vld [vmem:[#allocation9 + $0x178] sm:$0xff]
        %v2208 = vld [vmem:[#allocation9 + $0x180] sm:$0xff]
        %v2209 = vld [vmem:[#allocation9 + $0x188] sm:$0xff]
        %v2210 = vld [vmem:[#allocation9 + $0x190] sm:$0xff]
        %v2211 = vld [vmem:[#allocation9 + $0x198] sm:$0xff]
        %v2212 = vld [vmem:[#allocation9 + $0x1a0] sm:$0xff]
        %v2213 = vld [vmem:[#allocation9 + $0x1a8] sm:$0xff]
        %v2214 = vld [vmem:[#allocation9 + $0x1b0] sm:$0xff]
        %v2215 = vld [vmem:[#allocation9 + $0x1b8] sm:$0xff]
        %v2216 = vld [vmem:[#allocation9 + $0x1c0] sm:$0xff]
        %v2217 = vld [vmem:[#allocation9 + $0x1c8] sm:$0xff]
        %v2218 = vld [vmem:[#allocation9 + $0x1d0] sm:$0xff]
        %v2219 = vld [vmem:[#allocation9 + $0x1d8] sm:$0xff]
        %v2220 = vld [vmem:[#allocation9 + $0x1e0] sm:$0xff]
        %v2221 = vld [vmem:[#allocation9 + $0x1e8] sm:$0xff]
        %v2222 = vld [vmem:[#allocation9 + $0x1f0] sm:$0xff]
        %v2223 = vld [vmem:[#allocation9 + $0x1f8] sm:$0xff]
        %v2224 = vld [vmem:[#allocation9 + $0x200] sm:$0xff]
        %v2225 = vld [vmem:[#allocation9 + $0x208] sm:$0xff]
        %v2226 = vld [vmem:[#allocation9 + $0x210] sm:$0xff]
        %v2227 = vld [vmem:[#allocation9 + $0x218] sm:$0xff]
        %v2228 = vld [vmem:[#allocation9 + $0x220] sm:$0xff]
        %v2229 = vld [vmem:[#allocation9 + $0x228] sm:$0xff]
        %v2230 = vld [vmem:[#allocation9 + $0x230] sm:$0xff]
        %v2231 = vld [vmem:[#allocation9 + $0x238] sm:$0xff]
        %v2232 = vld [vmem:[#allocation9 + $0x240] sm:$0xff]
        %v2233 = vld [vmem:[#allocation9 + $0x248] sm:$0xff]
        %v2234 = vld [vmem:[#allocation9 + $0x250] sm:$0xff]
        %v2235 = vld [vmem:[#allocation9 + $0x258] sm:$0xff]
        %v2236 = vld [vmem:[#allocation9 + $0x260] sm:$0xff]
        %v2237 = vld [vmem:[#allocation9 + $0x268] sm:$0xff]
        %v2238 = vld [vmem:[#allocation9 + $0x270] sm:$0xff]
        %v2239 = vld [vmem:[#allocation9 + $0x278] sm:$0xff]
        %v2240 = vld [vmem:[#allocation9 + $0x280] sm:$0xff]
        %v2241 = vld [vmem:[#allocation9 + $0x288] sm:$0xff]
        %v2242 = vld [vmem:[#allocation9 + $0x290] sm:$0xff]
        %v2243 = vld [vmem:[#allocation9 + $0x298] sm:$0xff]
        %v2244 = vld [vmem:[#allocation9 + $0x2a0] sm:$0xff]
        %v2245 = vld [vmem:[#allocation9 + $0x2a8] sm:$0xff]
        %v2246 = vld [vmem:[#allocation9 + $0x2b0] sm:$0xff]
        %v2247 = vld [vmem:[#allocation9 + $0x2b8] sm:$0xff]
        %v2248 = vld [vmem:[#allocation9 + $0x2c0] sm:$0xff]
        %v2249 = vld [vmem:[#allocation9 + $0x2c8] sm:$0xff]
        %v2250 = vld [vmem:[#allocation9 + $0x2d0] sm:$0xff]
        %v2251 = vld [vmem:[#allocation9 + $0x2d8] sm:$0xff]
        %v2252 = vld [vmem:[#allocation9 + $0x2e0] sm:$0xff]
        %v2253 = vld [vmem:[#allocation9 + $0x2e8] sm:$0xff]
        %v2254 = vld [vmem:[#allocation9 + $0x2f0] sm:$0xff]
        %v2255 = vld [vmem:[#allocation9 + $0x2f8] sm:$0xff]
        %v2256 = vld [vmem:[#allocation9 + $0x300] sm:$0xff]
        %v2257 = vld [vmem:[#allocation9 + $0x308] sm:$0xff]
        %v2258 = vld [vmem:[#allocation9 + $0x310] sm:$0xff]
        %v2259 = vld [vmem:[#allocation9 + $0x318] sm:$0xff]
        %v2260 = vld [vmem:[#allocation9 + $0x320] sm:$0xff]
        %v2261 = vld [vmem:[#allocation9 + $0x328] sm:$0xff]
        %v2262 = vld [vmem:[#allocation9 + $0x330] sm:$0xff]
        %v2263 = vld [vmem:[#allocation9 + $0x338] sm:$0xff]
        %v2264 = vld [vmem:[#allocation9 + $0x340] sm:$0xff]
        %v2265 = vld [vmem:[#allocation9 + $0x348] sm:$0xff]
        %v2266 = vld [vmem:[#allocation9 + $0x350] sm:$0xff]
        %v2267 = vld [vmem:[#allocation9 + $0x358] sm:$0xff]
        %v2268 = vld [vmem:[#allocation9 + $0x360] sm:$0xff]
        %v2269 = vld [vmem:[#allocation9 + $0x368] sm:$0xff]
        %v2270 = vld [vmem:[#allocation9 + $0x370] sm:$0xff]
        %v2271 = vld [vmem:[#allocation9 + $0x378] sm:$0xff]
        %v2272 = vld [vmem:[#allocation9 + $0x380] sm:$0xff]
        %v2273 = vld [vmem:[#allocation9 + $0x388] sm:$0xff]
        %v2274 = vld [vmem:[#allocation9 + $0x390] sm:$0xff]
        %v2275 = vld [vmem:[#allocation9 + $0x398] sm:$0xff]
        %v2276 = vld [vmem:[#allocation9 + $0x3a0] sm:$0xff]
        %v2277 = vld [vmem:[#allocation9 + $0x3a8] sm:$0xff]
        %v2278 = vld [vmem:[#allocation9 + $0x3b0] sm:$0xff]
        %v2279 = vld [vmem:[#allocation9 + $0x3b8] sm:$0xff]
        %v2280 = vld [vmem:[#allocation9 + $0x3c0] sm:$0xff]
        %v2281 = vld [vmem:[#allocation9 + $0x3c8] sm:$0xff]
        %v2282 = vld [vmem:[#allocation9 + $0x3d0] sm:$0xff]
        %v2283 = vld [vmem:[#allocation9 + $0x3d8] sm:$0xff]
        %v2284 = vld [vmem:[#allocation9 + $0x3e0] sm:$0xff]
        %v2285 = vld [vmem:[#allocation9 + $0x3e8] sm:$0xff]
        %v2286 = vld [vmem:[#allocation9 + $0x3f0] sm:$0xff]
        %v2287 = vld [vmem:[#allocation9 + $0x3f8] sm:$0xff]
        %v2288 = vld [vmem:[%s6] sm:$0xff]
        %v2290 = vlaneseq
        %v2291 = vshrl.u32 %v2290, 7
        %v2292 = vsub.s32 0, %v2291
        %v2293 = vrot.slane %v2288, %v2292
        %v2294 = vlaneseq
        %v2295 = vshrl.u32 %v2294, 7
        %v2296 = vsub.s32 1, %v2295
        %v2297 = vrot.slane %v2288, %v2296
        %v2298 = vlaneseq
        %v2299 = vshrl.u32 %v2298, 7
        %v2300 = vsub.s32 2, %v2299
        %v2301 = vrot.slane %v2288, %v2300
        %v2302 = vlaneseq
        %v2303 = vshrl.u32 %v2302, 7
        %v2304 = vsub.s32 3, %v2303
        %v2305 = vrot.slane %v2288, %v2304
        %v2306 = vlaneseq
        %v2307 = vshrl.u32 %v2306, 7
        %v2308 = vsub.s32 4, %v2307
        %v2309 = vrot.slane %v2288, %v2308
        %v2310 = vlaneseq
        %v2311 = vshrl.u32 %v2310, 7
        %v2312 = vsub.s32 5, %v2311
        %v2313 = vrot.slane %v2288, %v2312
        %v2314 = vlaneseq
        %v2315 = vshrl.u32 %v2314, 7
        %v2316 = vsub.s32 6, %v2315
        %v2317 = vrot.slane %v2288, %v2316
        %v2318 = vlaneseq
        %v2319 = vshrl.u32 %v2318, 7
        %v2320 = vsub.s32 7, %v2319
        %v2321 = vrot.slane %v2288, %v2320
        %v2458 = vunpack.c.l.b16 %v2160
        %v2459 = vunpack.c.h.b16 %v2160
        %v2460 = vunpack.c.l.b16 %v2161
        %v2461 = vunpack.c.h.b16 %v2161
        %v2462 = vunpack.c.l.b16 %v2162
        %v2463 = vunpack.c.h.b16 %v2162
        %v2464 = vunpack.c.l.b16 %v2163
        %v2465 = vunpack.c.h.b16 %v2163
        %v2466 = vunpack.c.l.b16 %v2164
        %v2467 = vunpack.c.h.b16 %v2164
        %v2468 = vunpack.c.l.b16 %v2165
        %v2469 = vunpack.c.h.b16 %v2165
        %v2470 = vunpack.c.l.b16 %v2166
        %v2471 = vunpack.c.h.b16 %v2166
        %v2472 = vunpack.c.l.b16 %v2167
        %v2473 = vunpack.c.h.b16 %v2167
        %v2474 = vunpack.c.l.b16 %v2168
        %v2475 = vunpack.c.h.b16 %v2168
        %v2476 = vunpack.c.l.b16 %v2169
        %v2477 = vunpack.c.h.b16 %v2169
        %v2478 = vunpack.c.l.b16 %v2170
        %v2479 = vunpack.c.h.b16 %v2170
        %v2480 = vunpack.c.l.b16 %v2171
        %v2481 = vunpack.c.h.b16 %v2171
        %v2482 = vunpack.c.l.b16 %v2172
        %v2483 = vunpack.c.h.b16 %v2172
        %v2484 = vunpack.c.l.b16 %v2173
        %v2485 = vunpack.c.h.b16 %v2173
        %v2486 = vunpack.c.l.b16 %v2174
        %v2487 = vunpack.c.h.b16 %v2174
        %v2488 = vunpack.c.l.b16 %v2175
        %v2489 = vunpack.c.h.b16 %v2175
        %v2490 = vunpack.c.l.b16 %v2176
        %v2491 = vunpack.c.h.b16 %v2176
        %v2492 = vunpack.c.l.b16 %v2177
        %v2493 = vunpack.c.h.b16 %v2177
        %v2494 = vunpack.c.l.b16 %v2178
        %v2495 = vunpack.c.h.b16 %v2178
        %v2496 = vunpack.c.l.b16 %v2179
        %v2497 = vunpack.c.h.b16 %v2179
        %v2498 = vunpack.c.l.b16 %v2180
        %v2499 = vunpack.c.h.b16 %v2180
        %v2500 = vunpack.c.l.b16 %v2181
        %v2501 = vunpack.c.h.b16 %v2181
        %v2502 = vunpack.c.l.b16 %v2182
        %v2503 = vunpack.c.h.b16 %v2182
        %v2504 = vunpack.c.l.b16 %v2183
        %v2505 = vunpack.c.h.b16 %v2183
        %v2506 = vunpack.c.l.b16 %v2184
        %v2507 = vunpack.c.h.b16 %v2184
        %v2508 = vunpack.c.l.b16 %v2185
        %v2509 = vunpack.c.h.b16 %v2185
        %v2510 = vunpack.c.l.b16 %v2186
        %v2511 = vunpack.c.h.b16 %v2186
        %v2512 = vunpack.c.l.b16 %v2187
        %v2513 = vunpack.c.h.b16 %v2187
        %v2514 = vunpack.c.l.b16 %v2188
        %v2515 = vunpack.c.h.b16 %v2188
        %v2516 = vunpack.c.l.b16 %v2189
        %v2517 = vunpack.c.h.b16 %v2189
        %v2518 = vunpack.c.l.b16 %v2190
        %v2519 = vunpack.c.h.b16 %v2190
        %v2520 = vunpack.c.l.b16 %v2191
        %v2521 = vunpack.c.h.b16 %v2191
        %v2522 = vunpack.c.l.b16 %v2192
        %v2523 = vunpack.c.h.b16 %v2192
        %v2524 = vunpack.c.l.b16 %v2193
        %v2525 = vunpack.c.h.b16 %v2193
        %v2526 = vunpack.c.l.b16 %v2194
        %v2527 = vunpack.c.h.b16 %v2194
        %v2528 = vunpack.c.l.b16 %v2195
        %v2529 = vunpack.c.h.b16 %v2195
        %v2530 = vunpack.c.l.b16 %v2196
        %v2531 = vunpack.c.h.b16 %v2196
        %v2532 = vunpack.c.l.b16 %v2197
        %v2533 = vunpack.c.h.b16 %v2197
        %v2534 = vunpack.c.l.b16 %v2198
        %v2535 = vunpack.c.h.b16 %v2198
        %v2536 = vunpack.c.l.b16 %v2199
        %v2537 = vunpack.c.h.b16 %v2199
        %v2538 = vunpack.c.l.b16 %v2200
        %v2539 = vunpack.c.h.b16 %v2200
        %v2540 = vunpack.c.l.b16 %v2201
        %v2541 = vunpack.c.h.b16 %v2201
        %v2542 = vunpack.c.l.b16 %v2202
        %v2543 = vunpack.c.h.b16 %v2202
        %v2544 = vunpack.c.l.b16 %v2203
        %v2545 = vunpack.c.h.b16 %v2203
        %v2546 = vunpack.c.l.b16 %v2204
        %v2547 = vunpack.c.h.b16 %v2204
        %v2548 = vunpack.c.l.b16 %v2205
        %v2549 = vunpack.c.h.b16 %v2205
        %v2550 = vunpack.c.l.b16 %v2206
        %v2551 = vunpack.c.h.b16 %v2206
        %v2552 = vunpack.c.l.b16 %v2207
        %v2553 = vunpack.c.h.b16 %v2207
        %v2554 = vunpack.c.l.b16 %v2208
        %v2555 = vunpack.c.h.b16 %v2208
        %v2556 = vunpack.c.l.b16 %v2209
        %v2557 = vunpack.c.h.b16 %v2209
        %v2558 = vunpack.c.l.b16 %v2210
        %v2559 = vunpack.c.h.b16 %v2210
        %v2560 = vunpack.c.l.b16 %v2211
        %v2561 = vunpack.c.h.b16 %v2211
        %v2562 = vunpack.c.l.b16 %v2212
        %v2563 = vunpack.c.h.b16 %v2212
        %v2564 = vunpack.c.l.b16 %v2213
        %v2565 = vunpack.c.h.b16 %v2213
        %v2566 = vunpack.c.l.b16 %v2214
        %v2567 = vunpack.c.h.b16 %v2214
        %v2568 = vunpack.c.l.b16 %v2215
        %v2569 = vunpack.c.h.b16 %v2215
        %v2570 = vunpack.c.l.b16 %v2216
        %v2571 = vunpack.c.h.b16 %v2216
        %v2572 = vunpack.c.l.b16 %v2217
        %v2573 = vunpack.c.h.b16 %v2217
        %v2574 = vunpack.c.l.b16 %v2218
        %v2575 = vunpack.c.h.b16 %v2218
        %v2576 = vunpack.c.l.b16 %v2219
        %v2577 = vunpack.c.h.b16 %v2219
        %v2578 = vunpack.c.l.b16 %v2220
        %v2579 = vunpack.c.h.b16 %v2220
        %v2580 = vunpack.c.l.b16 %v2221
        %v2581 = vunpack.c.h.b16 %v2221
        %v2582 = vunpack.c.l.b16 %v2222
        %v2583 = vunpack.c.h.b16 %v2222
        %v2584 = vunpack.c.l.b16 %v2223
        %v2585 = vunpack.c.h.b16 %v2223
        %v2586 = vunpack.c.l.b16 %v2224
        %v2587 = vunpack.c.h.b16 %v2224
        %v2588 = vunpack.c.l.b16 %v2225
        %v2589 = vunpack.c.h.b16 %v2225
        %v2590 = vunpack.c.l.b16 %v2226
        %v2591 = vunpack.c.h.b16 %v2226
        %v2592 = vunpack.c.l.b16 %v2227
        %v2593 = vunpack.c.h.b16 %v2227
        %v2594 = vunpack.c.l.b16 %v2228
        %v2595 = vunpack.c.h.b16 %v2228
        %v2596 = vunpack.c.l.b16 %v2229
        %v2597 = vunpack.c.h.b16 %v2229
        %v2598 = vunpack.c.l.b16 %v2230
        %v2599 = vunpack.c.h.b16 %v2230
        %v2600 = vunpack.c.l.b16 %v2231
        %v2601 = vunpack.c.h.b16 %v2231
        %v2602 = vunpack.c.l.b16 %v2232
        %v2603 = vunpack.c.h.b16 %v2232
        %v2604 = vunpack.c.l.b16 %v2233
        %v2605 = vunpack.c.h.b16 %v2233
        %v2606 = vunpack.c.l.b16 %v2234
        %v2607 = vunpack.c.h.b16 %v2234
        %v2608 = vunpack.c.l.b16 %v2235
        %v2609 = vunpack.c.h.b16 %v2235
        %v2610 = vunpack.c.l.b16 %v2236
        %v2611 = vunpack.c.h.b16 %v2236
        %v2612 = vunpack.c.l.b16 %v2237
        %v2613 = vunpack.c.h.b16 %v2237
        %v2614 = vunpack.c.l.b16 %v2238
        %v2615 = vunpack.c.h.b16 %v2238
        %v2616 = vunpack.c.l.b16 %v2239
        %v2617 = vunpack.c.h.b16 %v2239
        %v2618 = vunpack.c.l.b16 %v2240
        %v2619 = vunpack.c.h.b16 %v2240
        %v2620 = vunpack.c.l.b16 %v2241
        %v2621 = vunpack.c.h.b16 %v2241
        %v2622 = vunpack.c.l.b16 %v2242
        %v2623 = vunpack.c.h.b16 %v2242
        %v2624 = vunpack.c.l.b16 %v2243
        %v2625 = vunpack.c.h.b16 %v2243
        %v2626 = vunpack.c.l.b16 %v2244
        %v2627 = vunpack.c.h.b16 %v2244
        %v2628 = vunpack.c.l.b16 %v2245
        %v2629 = vunpack.c.h.b16 %v2245
        %v2630 = vunpack.c.l.b16 %v2246
        %v2631 = vunpack.c.h.b16 %v2246
        %v2632 = vunpack.c.l.b16 %v2247
        %v2633 = vunpack.c.h.b16 %v2247
        %v2634 = vunpack.c.l.b16 %v2248
        %v2635 = vunpack.c.h.b16 %v2248
        %v2636 = vunpack.c.l.b16 %v2249
        %v2637 = vunpack.c.h.b16 %v2249
        %v2638 = vunpack.c.l.b16 %v2250
        %v2639 = vunpack.c.h.b16 %v2250
        %v2640 = vunpack.c.l.b16 %v2251
        %v2641 = vunpack.c.h.b16 %v2251
        %v2642 = vunpack.c.l.b16 %v2252
        %v2643 = vunpack.c.h.b16 %v2252
        %v2644 = vunpack.c.l.b16 %v2253
        %v2645 = vunpack.c.h.b16 %v2253
        %v2646 = vunpack.c.l.b16 %v2254
        %v2647 = vunpack.c.h.b16 %v2254
        %v2648 = vunpack.c.l.b16 %v2255
        %v2649 = vunpack.c.h.b16 %v2255
        %v2650 = vunpack.c.l.b16 %v2256
        %v2651 = vunpack.c.h.b16 %v2256
        %v2652 = vunpack.c.l.b16 %v2257
        %v2653 = vunpack.c.h.b16 %v2257
        %v2654 = vunpack.c.l.b16 %v2258
        %v2655 = vunpack.c.h.b16 %v2258
        %v2656 = vunpack.c.l.b16 %v2259
        %v2657 = vunpack.c.h.b16 %v2259
        %v2658 = vunpack.c.l.b16 %v2260
        %v2659 = vunpack.c.h.b16 %v2260
        %v2660 = vunpack.c.l.b16 %v2261
        %v2661 = vunpack.c.h.b16 %v2261
        %v2662 = vunpack.c.l.b16 %v2262
        %v2663 = vunpack.c.h.b16 %v2262
        %v2664 = vunpack.c.l.b16 %v2263
        %v2665 = vunpack.c.h.b16 %v2263
        %v2666 = vunpack.c.l.b16 %v2264
        %v2667 = vunpack.c.h.b16 %v2264
        %v2668 = vunpack.c.l.b16 %v2265
        %v2669 = vunpack.c.h.b16 %v2265
        %v2670 = vunpack.c.l.b16 %v2266
        %v2671 = vunpack.c.h.b16 %v2266
        %v2672 = vunpack.c.l.b16 %v2267
        %v2673 = vunpack.c.h.b16 %v2267
        %v2674 = vunpack.c.l.b16 %v2268
        %v2675 = vunpack.c.h.b16 %v2268
        %v2676 = vunpack.c.l.b16 %v2269
        %v2677 = vunpack.c.h.b16 %v2269
        %v2678 = vunpack.c.l.b16 %v2270
        %v2679 = vunpack.c.h.b16 %v2270
        %v2680 = vunpack.c.l.b16 %v2271
        %v2681 = vunpack.c.h.b16 %v2271
        %v2682 = vunpack.c.l.b16 %v2272
        %v2683 = vunpack.c.h.b16 %v2272
        %v2684 = vunpack.c.l.b16 %v2273
        %v2685 = vunpack.c.h.b16 %v2273
        %v2686 = vunpack.c.l.b16 %v2274
        %v2687 = vunpack.c.h.b16 %v2274
        %v2688 = vunpack.c.l.b16 %v2275
        %v2689 = vunpack.c.h.b16 %v2275
        %v2690 = vunpack.c.l.b16 %v2276
        %v2691 = vunpack.c.h.b16 %v2276
        %v2692 = vunpack.c.l.b16 %v2277
        %v2693 = vunpack.c.h.b16 %v2277
        %v2694 = vunpack.c.l.b16 %v2278
        %v2695 = vunpack.c.h.b16 %v2278
        %v2696 = vunpack.c.l.b16 %v2279
        %v2697 = vunpack.c.h.b16 %v2279
        %v2698 = vunpack.c.l.b16 %v2280
        %v2699 = vunpack.c.h.b16 %v2280
        %v2700 = vunpack.c.l.b16 %v2281
        %v2701 = vunpack.c.h.b16 %v2281
        %v2702 = vunpack.c.l.b16 %v2282
        %v2703 = vunpack.c.h.b16 %v2282
        %v2704 = vunpack.c.l.b16 %v2283
        %v2705 = vunpack.c.h.b16 %v2283
        %v2706 = vunpack.c.l.b16 %v2284
        %v2707 = vunpack.c.h.b16 %v2284
        %v2708 = vunpack.c.l.b16 %v2285
        %v2709 = vunpack.c.h.b16 %v2285
        %v2710 = vunpack.c.l.b16 %v2286
        %v2711 = vunpack.c.h.b16 %v2286
        %v2712 = vunpack.c.l.b16 %v2287
        %v2713 = vunpack.c.h.b16 %v2287
        %v2714 = vpack.c.b16 %v2466, %v2458
        %v2715 = vpack.c.b16 %v2467, %v2459
        %v2716 = vpack.c.b16 %v2468, %v2460
        %v2717 = vpack.c.b16 %v2469, %v2461
        %v2718 = vpack.c.b16 %v2470, %v2462
        %v2719 = vpack.c.b16 %v2471, %v2463
        %v2720 = vpack.c.b16 %v2472, %v2464
        %v2721 = vpack.c.b16 %v2473, %v2465
        %v2722 = vpack.c.b16 %v2482, %v2474
        %v2723 = vpack.c.b16 %v2483, %v2475
        %v2724 = vpack.c.b16 %v2484, %v2476
        %v2725 = vpack.c.b16 %v2485, %v2477
        %v2726 = vpack.c.b16 %v2486, %v2478
        %v2727 = vpack.c.b16 %v2487, %v2479
        %v2728 = vpack.c.b16 %v2488, %v2480
        %v2729 = vpack.c.b16 %v2489, %v2481
        %v2730 = vpack.c.b16 %v2498, %v2490
        %v2731 = vpack.c.b16 %v2499, %v2491
        %v2732 = vpack.c.b16 %v2500, %v2492
        %v2733 = vpack.c.b16 %v2501, %v2493
        %v2734 = vpack.c.b16 %v2502, %v2494
        %v2735 = vpack.c.b16 %v2503, %v2495
        %v2736 = vpack.c.b16 %v2504, %v2496
        %v2737 = vpack.c.b16 %v2505, %v2497
        %v2738 = vpack.c.b16 %v2514, %v2506
        %v2739 = vpack.c.b16 %v2515, %v2507
        %v2740 = vpack.c.b16 %v2516, %v2508
        %v2741 = vpack.c.b16 %v2517, %v2509
        %v2742 = vpack.c.b16 %v2518, %v2510
        %v2743 = vpack.c.b16 %v2519, %v2511
        %v2744 = vpack.c.b16 %v2520, %v2512
        %v2745 = vpack.c.b16 %v2521, %v2513
        %v2746 = vpack.c.b16 %v2530, %v2522
        %v2747 = vpack.c.b16 %v2531, %v2523
        %v2748 = vpack.c.b16 %v2532, %v2524
        %v2749 = vpack.c.b16 %v2533, %v2525
        %v2750 = vpack.c.b16 %v2534, %v2526
        %v2751 = vpack.c.b16 %v2535, %v2527
        %v2752 = vpack.c.b16 %v2536, %v2528
        %v2753 = vpack.c.b16 %v2537, %v2529
        %v2754 = vpack.c.b16 %v2546, %v2538
        %v2755 = vpack.c.b16 %v2547, %v2539
        %v2756 = vpack.c.b16 %v2548, %v2540
        %v2757 = vpack.c.b16 %v2549, %v2541
        %v2758 = vpack.c.b16 %v2550, %v2542
        %v2759 = vpack.c.b16 %v2551, %v2543
        %v2760 = vpack.c.b16 %v2552, %v2544
        %v2761 = vpack.c.b16 %v2553, %v2545
        %v2762 = vpack.c.b16 %v2562, %v2554
        %v2763 = vpack.c.b16 %v2563, %v2555
        %v2764 = vpack.c.b16 %v2564, %v2556
        %v2765 = vpack.c.b16 %v2565, %v2557
        %v2766 = vpack.c.b16 %v2566, %v2558
        %v2767 = vpack.c.b16 %v2567, %v2559
        %v2768 = vpack.c.b16 %v2568, %v2560
        %v2769 = vpack.c.b16 %v2569, %v2561
        %v2770 = vpack.c.b16 %v2578, %v2570
        %v2771 = vpack.c.b16 %v2579, %v2571
        %v2772 = vpack.c.b16 %v2580, %v2572
        %v2773 = vpack.c.b16 %v2581, %v2573
        %v2774 = vpack.c.b16 %v2582, %v2574
        %v2775 = vpack.c.b16 %v2583, %v2575
        %v2776 = vpack.c.b16 %v2584, %v2576
        %v2777 = vpack.c.b16 %v2585, %v2577
        %v2778 = vpack.c.b16 %v2594, %v2586
        %v2779 = vpack.c.b16 %v2595, %v2587
        %v2780 = vpack.c.b16 %v2596, %v2588
        %v2781 = vpack.c.b16 %v2597, %v2589
        %v2782 = vpack.c.b16 %v2598, %v2590
        %v2783 = vpack.c.b16 %v2599, %v2591
        %v2784 = vpack.c.b16 %v2600, %v2592
        %v2785 = vpack.c.b16 %v2601, %v2593
        %v2786 = vpack.c.b16 %v2610, %v2602
        %v2787 = vpack.c.b16 %v2611, %v2603
        %v2788 = vpack.c.b16 %v2612, %v2604
        %v2789 = vpack.c.b16 %v2613, %v2605
        %v2790 = vpack.c.b16 %v2614, %v2606
        %v2791 = vpack.c.b16 %v2615, %v2607
        %v2792 = vpack.c.b16 %v2616, %v2608
        %v2793 = vpack.c.b16 %v2617, %v2609
        %v2794 = vpack.c.b16 %v2626, %v2618
        %v2795 = vpack.c.b16 %v2627, %v2619
        %v2796 = vpack.c.b16 %v2628, %v2620
        %v2797 = vpack.c.b16 %v2629, %v2621
        %v2798 = vpack.c.b16 %v2630, %v2622
        %v2799 = vpack.c.b16 %v2631, %v2623
        %v2800 = vpack.c.b16 %v2632, %v2624
        %v2801 = vpack.c.b16 %v2633, %v2625
        %v2802 = vpack.c.b16 %v2642, %v2634
        %v2803 = vpack.c.b16 %v2643, %v2635
        %v2804 = vpack.c.b16 %v2644, %v2636
        %v2805 = vpack.c.b16 %v2645, %v2637
        %v2806 = vpack.c.b16 %v2646, %v2638
        %v2807 = vpack.c.b16 %v2647, %v2639
        %v2808 = vpack.c.b16 %v2648, %v2640
        %v2809 = vpack.c.b16 %v2649, %v2641
        %v2810 = vpack.c.b16 %v2658, %v2650
        %v2811 = vpack.c.b16 %v2659, %v2651
        %v2812 = vpack.c.b16 %v2660, %v2652
        %v2813 = vpack.c.b16 %v2661, %v2653
        %v2814 = vpack.c.b16 %v2662, %v2654
        %v2815 = vpack.c.b16 %v2663, %v2655
        %v2816 = vpack.c.b16 %v2664, %v2656
        %v2817 = vpack.c.b16 %v2665, %v2657
        %v2818 = vpack.c.b16 %v2674, %v2666
        %v2819 = vpack.c.b16 %v2675, %v2667
        %v2820 = vpack.c.b16 %v2676, %v2668
        %v2821 = vpack.c.b16 %v2677, %v2669
        %v2822 = vpack.c.b16 %v2678, %v2670
        %v2823 = vpack.c.b16 %v2679, %v2671
        %v2824 = vpack.c.b16 %v2680, %v2672
        %v2825 = vpack.c.b16 %v2681, %v2673
        %v2826 = vpack.c.b16 %v2690, %v2682
        %v2827 = vpack.c.b16 %v2691, %v2683
        %v2828 = vpack.c.b16 %v2692, %v2684
        %v2829 = vpack.c.b16 %v2693, %v2685
        %v2830 = vpack.c.b16 %v2694, %v2686
        %v2831 = vpack.c.b16 %v2695, %v2687
        %v2832 = vpack.c.b16 %v2696, %v2688
        %v2833 = vpack.c.b16 %v2697, %v2689
        %v2834 = vpack.c.b16 %v2706, %v2698
        %v2835 = vpack.c.b16 %v2707, %v2699
        %v2836 = vpack.c.b16 %v2708, %v2700
        %v2837 = vpack.c.b16 %v2709, %v2701
        %v2838 = vpack.c.b16 %v2710, %v2702
        %v2839 = vpack.c.b16 %v2711, %v2703
        %v2840 = vpack.c.b16 %v2712, %v2704
        %v2841 = vpack.c.b16 %v2713, %v2705
        %2970 = vmatprep.subr.bf16.mxu0 %v2771
        %2971 = vmatpush1.bf16.msra.mxu0 %v2770
        %2972 = vmatprep.subr.bf16.mxu0 %v2763
        %2973 = vmatpush1.bf16.msra.mxu0 %v2762
        %2974 = vmatprep.subr.bf16.mxu0 %v2755
        %2975 = vmatpush1.bf16.msra.mxu0 %v2754
        %2976 = vmatprep.subr.bf16.mxu0 %v2747
        %2977 = vmatpush1.bf16.msra.mxu0 %v2746
        %2978 = vmatprep.subr.bf16.mxu0 %v2739
        %2979 = vmatpush1.bf16.msra.mxu0 %v2738
        %2980 = vmatprep.subr.bf16.mxu0 %v2731
        %2981 = vmatpush1.bf16.msra.mxu0 %v2730
        %2982 = vmatprep.subr.bf16.mxu0 %v2723
        %2983 = vmatpush1.bf16.msra.mxu0 %v2722
        %2984 = vmatprep.subr.bf16.mxu0 %v2715
        %2985 = vmatpush1.bf16.msra.mxu0 %v2714
        %2986 = vmatprep.subr.bf16.mxu0 %v2835
        %2987 = vmatpush2.bf16.msra.mxu0 %v2834
        %2988 = vmatprep.subr.bf16.mxu0 %v2827
        %2989 = vmatpush2.bf16.msra.mxu0 %v2826
        %2990 = vmatprep.subr.bf16.mxu0 %v2819
        %2991 = vmatpush2.bf16.msra.mxu0 %v2818
        %2992 = vmatprep.subr.bf16.mxu0 %v2811
        %2993 = vmatpush2.bf16.msra.mxu0 %v2810
        %2994 = vmatprep.subr.bf16.mxu0 %v2803
        %2995 = vmatpush2.bf16.msra.mxu0 %v2802
        %2996 = vmatprep.subr.bf16.mxu0 %v2795
        %2997 = vmatpush2.bf16.msra.mxu0 %v2794
        %2998 = vmatprep.subr.bf16.mxu0 %v2787
        %2999 = vmatpush2.bf16.msra.mxu0 %v2786
        %3000 = vmatprep.subr.bf16.mxu0 %v2779
        %3001 = vmatpush2.bf16.msra.mxu0 %v2778
        %3002 = vmatprep.mubr.bf16.mxu0 %v2159
        %3003 = vmatmul.mubr.bf16.gmra.mxu0 %v2158
        %v3004 = vpop.f32.mrf.mxu0
        %v3005 = vadd.f32 %v2293, %v3004
        %v3006 = vpop.f32.mrf.mxu0
        %v3007 = vadd.f32 %v2297, %v3006
        %v3008 = vpop.f32.mrf.mxu0
        %v3009 = vadd.f32 %v2293, %v3008
        %v3010 = vpop.f32.mrf.mxu0
        %v3011 = vadd.f32 %v2297, %v3010
        %3012 = vdwg.mxu0
        %3013 = vmatprep.subr.bf16.mxu0 %v2773
        %3014 = vmatpush1.bf16.msra.mxu0 %v2772
        %3015 = vmatprep.subr.bf16.mxu0 %v2765
        %3016 = vmatpush1.bf16.msra.mxu0 %v2764
        %3017 = vmatprep.subr.bf16.mxu0 %v2757
        %3018 = vmatpush1.bf16.msra.mxu0 %v2756
        %3019 = vmatprep.subr.bf16.mxu0 %v2749
        %3020 = vmatpush1.bf16.msra.mxu0 %v2748
        %3021 = vmatprep.subr.bf16.mxu0 %v2741
        %3022 = vmatpush1.bf16.msra.mxu0 %v2740
        %3023 = vmatprep.subr.bf16.mxu0 %v2733
        %3024 = vmatpush1.bf16.msra.mxu0 %v2732
        %3025 = vmatprep.subr.bf16.mxu0 %v2725
        %3026 = vmatpush1.bf16.msra.mxu0 %v2724
        %3027 = vmatprep.subr.bf16.mxu0 %v2717
        %3028 = vmatpush1.bf16.msra.mxu0 %v2716
        %3029 = vmatprep.subr.bf16.mxu0 %v2837
        %3030 = vmatpush2.bf16.msra.mxu0 %v2836
        %3031 = vmatprep.subr.bf16.mxu0 %v2829
        %3032 = vmatpush2.bf16.msra.mxu0 %v2828
        %3033 = vmatprep.subr.bf16.mxu0 %v2821
        %3034 = vmatpush2.bf16.msra.mxu0 %v2820
        %3035 = vmatprep.subr.bf16.mxu0 %v2813
        %3036 = vmatpush2.bf16.msra.mxu0 %v2812
        %3037 = vmatprep.subr.bf16.mxu0 %v2805
        %3038 = vmatpush2.bf16.msra.mxu0 %v2804
        %3039 = vmatprep.subr.bf16.mxu0 %v2797
        %3040 = vmatpush2.bf16.msra.mxu0 %v2796
        %3041 = vmatprep.subr.bf16.mxu0 %v2789
        %3042 = vmatpush2.bf16.msra.mxu0 %v2788
        %3043 = vmatprep.subr.bf16.mxu0 %v2781
        %3044 = vmatpush2.bf16.msra.mxu0 %v2780
        %3045 = vmatprep.mubr.bf16.mxu0 %v2159
        %3046 = vmatmul.mubr.bf16.gmra.mxu0 %v2158
        %v3047 = vpop.f32.mrf.mxu0
        %v3048 = vadd.f32 %v2301, %v3047
        %v3049 = vpop.f32.mrf.mxu0
        %v3050 = vadd.f32 %v2305, %v3049
        %v3051 = vpop.f32.mrf.mxu0
        %v3052 = vadd.f32 %v2301, %v3051
        %v3053 = vpop.f32.mrf.mxu0
        %v3054 = vadd.f32 %v2305, %v3053
        %3055 = vdwg.mxu0
        %3056 = vmatprep.subr.bf16.mxu0 %v2775
        %3057 = vmatpush1.bf16.msra.mxu0 %v2774
        %3058 = vmatprep.subr.bf16.mxu0 %v2767
        %3059 = vmatpush1.bf16.msra.mxu0 %v2766
        %3060 = vmatprep.subr.bf16.mxu0 %v2759
        %3061 = vmatpush1.bf16.msra.mxu0 %v2758
        %3062 = vmatprep.subr.bf16.mxu0 %v2751
        %3063 = vmatpush1.bf16.msra.mxu0 %v2750
        %3064 = vmatprep.subr.bf16.mxu0 %v2743
        %3065 = vmatpush1.bf16.msra.mxu0 %v2742
        %3066 = vmatprep.subr.bf16.mxu0 %v2735
        %3067 = vmatpush1.bf16.msra.mxu0 %v2734
        %3068 = vmatprep.subr.bf16.mxu0 %v2727
        %3069 = vmatpush1.bf16.msra.mxu0 %v2726
        %3070 = vmatprep.subr.bf16.mxu0 %v2719
        %3071 = vmatpush1.bf16.msra.mxu0 %v2718
        %3072 = vmatprep.subr.bf16.mxu0 %v2839
        %3073 = vmatpush2.bf16.msra.mxu0 %v2838
        %3074 = vmatprep.subr.bf16.mxu0 %v2831
        %3075 = vmatpush2.bf16.msra.mxu0 %v2830
        %3076 = vmatprep.subr.bf16.mxu0 %v2823
        %3077 = vmatpush2.bf16.msra.mxu0 %v2822
        %3078 = vmatprep.subr.bf16.mxu0 %v2815
        %3079 = vmatpush2.bf16.msra.mxu0 %v2814
        %3080 = vmatprep.subr.bf16.mxu0 %v2807
        %3081 = vmatpush2.bf16.msra.mxu0 %v2806
        %3082 = vmatprep.subr.bf16.mxu0 %v2799
        %3083 = vmatpush2.bf16.msra.mxu0 %v2798
        %3084 = vmatprep.subr.bf16.mxu0 %v2791
        %3085 = vmatpush2.bf16.msra.mxu0 %v2790
        %3086 = vmatprep.subr.bf16.mxu0 %v2783
        %3087 = vmatpush2.bf16.msra.mxu0 %v2782
        %3088 = vmatprep.mubr.bf16.mxu0 %v2159
        %3089 = vmatmul.mubr.bf16.gmra.mxu0 %v2158
        %v3090 = vpop.f32.mrf.mxu0
        %v3091 = vadd.f32 %v2309, %v3090
        %v3092 = vpop.f32.mrf.mxu0
        %v3093 = vadd.f32 %v2313, %v3092
        %v3094 = vpop.f32.mrf.mxu0
        %v3095 = vadd.f32 %v2309, %v3094
        %v3096 = vpop.f32.mrf.mxu0
        %v3097 = vadd.f32 %v2313, %v3096
        %3098 = vdwg.mxu0
        %3099 = vmatprep.subr.bf16.mxu0 %v2777
        %3100 = vmatpush1.bf16.msra.mxu0 %v2776
        %3101 = vmatprep.subr.bf16.mxu0 %v2769
        %3102 = vmatpush1.bf16.msra.mxu0 %v2768
        %3103 = vmatprep.subr.bf16.mxu0 %v2761
        %3104 = vmatpush1.bf16.msra.mxu0 %v2760
        %3105 = vmatprep.subr.bf16.mxu0 %v2753
        %3106 = vmatpush1.bf16.msra.mxu0 %v2752
        %3107 = vmatprep.subr.bf16.mxu0 %v2745
        %3108 = vmatpush1.bf16.msra.mxu0 %v2744
        %3109 = vmatprep.subr.bf16.mxu0 %v2737
        %3110 = vmatpush1.bf16.msra.mxu0 %v2736
        %3111 = vmatprep.subr.bf16.mxu0 %v2729
        %3112 = vmatpush1.bf16.msra.mxu0 %v2728
        %3113 = vmatprep.subr.bf16.mxu0 %v2721
        %3114 = vmatpush1.bf16.msra.mxu0 %v2720
        %3115 = vmatprep.subr.bf16.mxu0 %v2841
        %3116 = vmatpush2.bf16.msra.mxu0 %v2840
        %3117 = vmatprep.subr.bf16.mxu0 %v2833
        %3118 = vmatpush2.bf16.msra.mxu0 %v2832
        %3119 = vmatprep.subr.bf16.mxu0 %v2825
        %3120 = vmatpush2.bf16.msra.mxu0 %v2824
        %3121 = vmatprep.subr.bf16.mxu0 %v2817
        %3122 = vmatpush2.bf16.msra.mxu0 %v2816
        %3123 = vmatprep.subr.bf16.mxu0 %v2809
        %3124 = vmatpush2.bf16.msra.mxu0 %v2808
        %3125 = vmatprep.subr.bf16.mxu0 %v2801
        %3126 = vmatpush2.bf16.msra.mxu0 %v2800
        %3127 = vmatprep.subr.bf16.mxu0 %v2793
        %3128 = vmatpush2.bf16.msra.mxu0 %v2792
        %3129 = vmatprep.subr.bf16.mxu0 %v2785
        %3130 = vmatpush2.bf16.msra.mxu0 %v2784
        %3131 = vmatprep.mubr.bf16.mxu0 %v2159
        %3132 = vmatmul.mubr.bf16.gmra.mxu0 %v2158
        %v3133 = vpop.f32.mrf.mxu0
        %v3134 = vadd.f32 %v2317, %v3133
        %v3135 = vpop.f32.mrf.mxu0
        %v3136 = vadd.f32 %v2321, %v3135
        %v3137 = vpop.f32.mrf.mxu0
        %v3138 = vadd.f32 %v2317, %v3137
        %v3139 = vpop.f32.mrf.mxu0
        %v3140 = vadd.f32 %v2321, %v3139
        %3141 = vdwg.mxu0
        %v3142 = vld [vmem:[%s306] sm:$0xff]
        %v3143 = vld [vmem:[%s306 + $0x8] sm:$0xff]
        %v3144 = vld [vmem:[%s306 + $0x10] sm:$0xff]
        %v3145 = vld [vmem:[%s306 + $0x18] sm:$0xff]
        %v3146 = vld [vmem:[%s306 + $0x20] sm:$0xff]
        %v3147 = vld [vmem:[%s306 + $0x28] sm:$0xff]
        %v3148 = vld [vmem:[%s306 + $0x30] sm:$0xff]
        %v3149 = vld [vmem:[%s306 + $0x38] sm:$0xff]
        %v3150 = vld [vmem:[%s306 + $0x40] sm:$0xff]
        %v3151 = vld [vmem:[%s306 + $0x48] sm:$0xff]
        %v3152 = vld [vmem:[%s306 + $0x50] sm:$0xff]
        %v3153 = vld [vmem:[%s306 + $0x58] sm:$0xff]
        %v3154 = vld [vmem:[%s306 + $0x60] sm:$0xff]
        %v3155 = vld [vmem:[%s306 + $0x68] sm:$0xff]
        %v3156 = vld [vmem:[%s306 + $0x70] sm:$0xff]
        %v3157 = vld [vmem:[%s306 + $0x78] sm:$0xff]
        %v3158 = vadd.f32 %v3005, %v3142
        %v3159 = vadd.f32 %v3007, %v3143
        %v3160 = vadd.f32 %v3048, %v3144
        %v3161 = vadd.f32 %v3050, %v3145
        %v3162 = vadd.f32 %v3091, %v3146
        %v3163 = vadd.f32 %v3093, %v3147
        %v3164 = vadd.f32 %v3134, %v3148
        %v3165 = vadd.f32 %v3136, %v3149
        %v3166 = vadd.f32 %v3009, %v3150
        %v3167 = vadd.f32 %v3011, %v3151
        %v3168 = vadd.f32 %v3052, %v3152
        %v3169 = vadd.f32 %v3054, %v3153
        %v3170 = vadd.f32 %v3095, %v3154
        %v3171 = vadd.f32 %v3097, %v3155
        %v3172 = vadd.f32 %v3138, %v3156
        %v3173 = vadd.f32 %v3140, %v3157
        %v3174 = vmax.f32 %v3158, 0.0
        %v3175 = vmax.f32 %v3159, 0.0
        %v3176 = vmax.f32 %v3160, 0.0
        %v3177 = vmax.f32 %v3161, 0.0
        %v3178 = vmax.f32 %v3162, 0.0
        %v3179 = vmax.f32 %v3163, 0.0
        %v3180 = vmax.f32 %v3164, 0.0
        %v3181 = vmax.f32 %v3165, 0.0
        %v3182 = vmax.f32 %v3166, 0.0
        %v3183 = vmax.f32 %v3167, 0.0
        %v3184 = vmax.f32 %v3168, 0.0
        %v3185 = vmax.f32 %v3169, 0.0
        %v3186 = vmax.f32 %v3170, 0.0
        %v3187 = vmax.f32 %v3171, 0.0
        %v3188 = vmax.f32 %v3172, 0.0
        %v3189 = vmax.f32 %v3173, 0.0
        %3190 = vst [vmem:[%s352] sm:$0xff] %v3174
        %3191 = vst [vmem:[%s352 + $0x8] sm:$0xff] %v3175
        %3192 = vst [vmem:[%s352 + $0x10] sm:$0xff] %v3176
        %3193 = vst [vmem:[%s352 + $0x18] sm:$0xff] %v3177
        %3194 = vst [vmem:[%s352 + $0x20] sm:$0xff] %v3178
        %3195 = vst [vmem:[%s352 + $0x28] sm:$0xff] %v3179
        %3196 = vst [vmem:[%s352 + $0x30] sm:$0xff] %v3180
        %3197 = vst [vmem:[%s352 + $0x38] sm:$0xff] %v3181
        %3198 = vst [vmem:[%s352 + $0x40] sm:$0xff] %v3182
        %3199 = vst [vmem:[%s352 + $0x48] sm:$0xff] %v3183
        %3200 = vst [vmem:[%s352 + $0x50] sm:$0xff] %v3184
        %3201 = vst [vmem:[%s352 + $0x58] sm:$0xff] %v3185
        %3202 = vst [vmem:[%s352 + $0x60] sm:$0xff] %v3186
        %3203 = vst [vmem:[%s352 + $0x68] sm:$0xff] %v3187
        %3204 = vst [vmem:[%s352 + $0x70] sm:$0xff] %v3188
        %3205 = vst [vmem:[%s352 + $0x78] sm:$0xff] %v3189
        %s3206 = sand.u32 %s186, 1
        %s3207 = scalar_lea.sflag [#allocation5], %s3206
        %s3208 = sand.u32 %s186, 1
        %s3209 = smul.addr %s3208, 128
        %s3210 = scalar_lea.vmem [#allocation12], %s3209
        // Predicated region
        $region69: #{tpu_custom_call.1} parent=47 // pred_check
          %p3211 = pneg %p196
        $region70: #{tpu_custom_call.1} parent=47 // pred_check_branch
          %3213 = sbr.rel (%p3211) target = $region72
        $region71: #{tpu_custom_call.1} parent=47 // pred_region
          %s3215 = ssub.s32 2048, 2048
          %3216 = vsyncadd %s3207, %s3215
          %s3217 = smul.addr %s26, 16
          %s3218 = smul.addr %s3217, 128
          %s3219 = scalar_lea.hbm %s7, %s3218
          %s3220 = sshll.u32 %s3210, 4
          %s3221 = int_to_ptr.vmem [resolvable:$true] %s3220
          %3226 = dma.vmem_to_hbm [thread:$0]  %s3221, 2048, %s3219, %s3207, 1024, 1024, 64
        $region72: #{tpu_custom_call.1} parent=47 // pred_fallthru
          _
      $region48: #{tpu_custom_call.1} parent=5 // pred_fallthru
        _
      %p3227 = scmp.le.s32.totalorder 2, %s21
      // Predicated region
      $region73: #{tpu_custom_call.1} parent=5 // pred_check
        %p3228 = pneg %p3227
      $region74: #{tpu_custom_call.1} parent=5 // pred_check_branch
        %3230 = sbr.rel (%p3228) target = $region76
      $region75: #{tpu_custom_call.1} parent=5 // pred_region
        %s3231 = ssub.s32 %s21, 2
        // Predicated region
        $region77: #{tpu_custom_call.1} parent=75 // pred_check
          %p3232 = pneg %p202
        $region78: #{tpu_custom_call.1} parent=75 // pred_check_branch
          %3234 = sbr.rel (%p3232) target = $region80
        $region79: #{tpu_custom_call.1} parent=75 // pred_region
          %s3235 = sand.u32 %s187, 1
          %s3236 = scalar_lea.sflag [#allocation5], %s3235
          %s3237 = sand.u32 %s187, 1
          %s3238 = smul.addr %s3237, 128
          %s3239 = scalar_lea.vmem [#allocation12], %s3238
          %3240 = dma.done %s3236, 2048
        $region80: #{tpu_custom_call.1} parent=75 // pred_fallthru
          _
      $region76: #{tpu_custom_call.1} parent=5 // pred_fallthru
        _
    $region6: #{tpu_custom_call.1} parent=1 // loop_footer
      %s25 = sadd.s32 1, %s21
    $region7: #{tpu_custom_call.1} parent=1 // loop_footer_branch
      %20 = sbr.rel target = $region3
    $region8: #{tpu_custom_call.1} parent=1 // loop_exit
      _
    %3241 = vsyncpa [#allocation4], 1
    %s3242 = scalar_lea.sflag [#allocation4], 1
    %3243 = vsyncpa %s3242, 1
    %3244 = vsyncpa [#allocation7], 1
    %3245 = vsyncpa [#allocation10], 1
    %3246 = vsyncpa [#allocation5], 1
    %s3247 = scalar_lea.sflag [#allocation5], 1
    %3248 = vsyncpa %s3247, 1

</llo_original>
